<compile_context>
chip_gen: v5e
topology: v5e:2x2
jax: 0.10.0
libtpu: 0.0.40
codegen_flags: <defaults>
</compile_context>

<pallas_src>
import math

import numpy as np

import jax
import jax.numpy as jnp
from jax.experimental import pallas as pl
from jax.experimental.pallas import tpu as pltpu


# ----------------------------- fused Pallas kernel -----------------------------

def _mnet_kernel(x_ref, t1_ref, b1_ref, s1e_ref, s1o_ref, r1e_ref, r1o_ref,
                 t2_ref, b2_ref, s2e_ref, s2o_ref, r2e_ref, r2o_ref,
                 gc_ref, gs_ref, fw1_ref, fb1_ref, fw2_ref, fb2_ref,
                 fw3_ref, fb3_ref, o_ref, p1_ref):
    K1 = t1_ref.shape[0]          # 5
    K2 = t2_ref.shape[0]          # 6
    R0 = r1e_ref.shape[1]         # bt*32: stacked rows of the conv1 stage
    R1 = r1e_ref.shape[0]         # bt*16: stacked rows of the pool1/conv2 stage
    PAD = p1_ref.shape[0] - R1    # zero-pad rows in the pool1 scratch

    def mm(a, b):
        # bf16 MXU inputs, f32 accumulation.
        return jnp.dot(a.astype(jnp.bfloat16), b.astype(jnp.bfloat16),
                       preferred_element_type=jnp.float32)

    # ---- conv1 + bias + ReLU: batch folded into rows (stride 32 per image) ----
    # kh-shifted windows come straight from the zero-padded input ref.
    acc1 = mm(x_ref[pl.ds(0, R0), :], t1_ref[0])
    for kh in range(1, K1):
        acc1 = acc1 + mm(x_ref[pl.ds(kh, R0), :], t1_ref[kh])
    h1 = jnp.maximum(acc1 + b1_ref[...], 0.0)                       # (R0, 168) f32

    # ---- 2x2 max-pool #1: columns via even/odd right selectors, rows via
    #      block-diagonal left selectors (valid pooled rows 0..13 per image).
    c1 = jnp.maximum(mm(h1, s1e_ref[...]), mm(h1, s1o_ref[...]))    # (R0, 84)
    p1 = jnp.maximum(mm(r1e_ref[...], c1), mm(r1o_ref[...], c1))    # (R1, 84)

    # Stash pool1 output (plus zeroed pad rows) so conv2's kh-shifted windows
    # are plain offset loads from VMEM.
    p1_ref[pl.ds(0, R1), :] = p1
    p1_ref[pl.ds(R1, PAD), :] = jnp.zeros((PAD, p1.shape[1]), jnp.float32)

    # ---- conv2 + bias + ReLU (stride 16 per image; valid rows 0..8) ----
    acc2 = mm(p1, t2_ref[0])
    for kh in range(1, K2):
        acc2 = acc2 + mm(p1_ref[pl.ds(kh, R1), :], t2_ref[kh])
    h2 = jnp.maximum(acc2 + b2_ref[...], 0.0)                       # (R1, 135)

    # ---- 2x2 max-pool #2 (floor mode: row/col 8 dropped) ----
    c2 = jnp.maximum(mm(h2, s2e_ref[...]), mm(h2, s2o_ref[...]))    # (R1, 60)
    p2 = jnp.maximum(mm(r2e_ref[...], c2), mm(r2o_ref[...], c2))    # (bt*4, 60)

    # ---- adaptive average pool to 1x1 (1/16 folded into gc) + per-image row sum
    q = mm(p2, gc_ref[...])                                         # (bt*4, 15)
    g = mm(gs_ref[...], q)                                          # (bt, 15)

    # ---- FC head ----
    z = jnp.maximum(mm(g, fw1_ref[...]) + fb1_ref[...], 0.0)
    z = jnp.maximum(mm(z, fw2_ref[...]) + fb2_ref[...], 0.0)
    o_ref[...] = mm(z, fw3_ref[...]) + fb3_ref[...]


# ----------------------------- pallas_call wrapper -----------------------------

def _const_spec(shape):
    nd = len(shape)

    def imap(i):
        return (0,) * nd            # same block every grid step -> stays resident

    return pl.BlockSpec(shape, imap)


def _batch_selectors(bt, H=32, K1=5, K2=6):
    """Tiny block-diagonal row-pool / GAP-sum selectors for one batch tile."""
    H1 = H - K1 + 1               # 28 conv1 output height
    S1 = H                        # 32 per-image row stride of the conv1 stack
    S2 = H // 2                   # 16 per-image row stride of the pool1 stack
    H2 = H1 // 2 - K2 + 1         # 9  conv2 output height
    P2 = H2 // 2                  # 4  pool2 output height (floor mode)

    l1e = np.zeros((S2, S1), np.float32)
    l1o = np.zeros((S2, S1), np.float32)
    for i in range(H1 // 2):                      # 14 valid pooled rows / image
        l1e[i, 2 * i] = 1.0
        l1o[i, 2 * i + 1] = 1.0
    l2e = np.zeros((P2, S2), np.float32)
    l2o = np.zeros((P2, S2), np.float32)
    for i in range(P2):
        l2e[i, 2 * i] = 1.0
        l2o[i, 2 * i + 1] = 1.0
    ls = np.ones((1, P2), np.float32)             # per-image GAP row sum

    eye = np.eye(bt, dtype=np.float32)
    mk = lambda m: jnp.asarray(np.kron(eye, m), jnp.bfloat16)
    return mk(l1e), mk(l1o), mk(l2e), mk(l2o), mk(ls)


def mnet_forward(operands, x_nchw):
    """operands: tuple from prepare_operands(); x_nchw: (B, 1, 32, 32)."""
    (t1, b1, s1e, s1o, t2, b2, s2e, s2o, gc,
     fw1, fb1, fw2, fb2, fw3, fb3) = operands

    B, cin, H, W = x_nchw.shape
    assert cin == 1 and (H, W) == (32, 32)

    # Batch tile: whole batch for small B (one grid step), else 8-image tiles on
    # a parallel grid axis (megacore / 2nd TensorCore on v7x).
    bt = B if B <= 8 else 8
    assert B % bt == 0, "batch must be a multiple of the batch tile"
    nt = B // bt
    rows = bt * H                  # stacked rows per tile (stride H per image)
    pad = 8                        # bottom pad so kh-shifted conv1 loads stay in bounds

    # (B,1,H,W) -> per-tile stacked rows, zero-padded at the bottom of each tile.
    x = x_nchw.astype(jnp.float32).reshape(nt, rows, W)
    x = jnp.pad(x, ((0, 0), (0, pad), (0, 0))).reshape(nt * (rows + pad), W)

    # Batch-tile-dependent (tiny) selectors, built once at trace time.
    r1e, r1o, r2e, r2o, gs = _batch_selectors(bt, H=H)

    all_ops = (x, t1, b1, s1e, s1o, r1e, r1o, t2, b2, s2e, s2o, r2e, r2o,
               gc, gs, fw1, fb1, fw2, fb2, fw3, fb3)

    n_out = fb3.shape[1]
    in_specs = [pl.BlockSpec((rows + pad, W), lambda i: (i, 0))]
    in_specs += [_const_spec(o.shape) for o in all_ops[1:]]

    return pl.pallas_call(
        _mnet_kernel,
        out_shape=jax.ShapeDtypeStruct((B, n_out), jnp.float32),
        grid=(nt,),
        in_specs=in_specs,
        out_specs=pl.BlockSpec((bt, n_out), lambda i: (i, 0)),
        scratch_shapes=[
            pltpu.VMEM((r1e.shape[0] + pad, s1e.shape[1]), jnp.float32)],
        compiler_params=pltpu.CompilerParams(
            dimension_semantics=("parallel",)),
    )(*all_ops)


# ----------------------------- weight packing (once) -----------------------------

def _conv_row_toeplitz(w_oihw, w_in):
    """T[kh, ci*w_in + xo + kw, co*w_out + xo] = w[co, ci, kh, kw]."""
    w = np.asarray(w_oihw, dtype=np.float32)
    c_out, c_in, k, _ = w.shape
    w_out = w_in - k + 1
    t = np.zeros((k, c_in * w_in, c_out * w_out), dtype=np.float32)
    xo = np.arange(w_out)
    for kh in range(k):
        for kw in range(k):
            for ci in range(c_in):
                for co in range(c_out):
                    t[kh, ci * w_in + xo + kw, co * w_out + xo] = w[co, ci, kh, kw]
    return t


def _col_pool_selectors(c, w_out):
    """Right-multiply selectors picking even/odd columns within each channel block."""
    wp = w_out // 2
    se = np.zeros((c * w_out, c * wp), np.float32)
    so = np.zeros((c * w_out, c * wp), np.float32)
    for ch in range(c):
        for j in range(wp):
            se[ch * w_out + 2 * j, ch * wp + j] = 1.0
            so[ch * w_out + 2 * j + 1, ch * wp + j] = 1.0
    return se, so


def _gap_matrix(c, wp, scale):
    g = np.zeros((c * wp, c), np.float32)
    for ch in range(c):
        for j in range(wp):
            g[ch * wp + j, ch] = scale
    return g


def prepare_operands(params, H=32, W=32):
    """One-time weight re-packing; matmul constants in bf16, biases in f32."""
    c1w = np.asarray(params["conv1_w"], np.float32)   # (6, 1, 5, 5)
    c1b = np.asarray(params["conv1_b"], np.float32)
    c2w = np.asarray(params["conv2_w"], np.float32)   # (15, 6, 6, 6)
    c2b = np.asarray(params["conv2_b"], np.float32)

    C1, _, K1, _ = c1w.shape
    C2, _, K2, _ = c2w.shape
    W1 = W - K1 + 1                                   # 28
    P1w = W1 // 2                                     # 14
    W2 = P1w - K2 + 1                                 # 9
    P2w, P2h = W2 // 2, W2 // 2                       # 4, 4

    t1 = _conv_row_toeplitz(c1w, W)                   # (5, 32, 168)
    b1e = np.repeat(c1b, W1)[None, :]                 # (1, 168)
    s1e, s1o = _col_pool_selectors(C1, W1)            # (168, 84)

    t2 = _conv_row_toeplitz(c2w, P1w)                 # (6, 84, 135)
    b2e = np.repeat(c2b, W2)[None, :]                 # (1, 135)
    s2e, s2o = _col_pool_selectors(C2, W2)            # (135, 60)

    gc = _gap_matrix(C2, P2w, 1.0 / float(P2w * P2h))  # (60, 15), 1/16 folded in

    bf = lambda a: jnp.asarray(a, jnp.bfloat16)
    f32 = lambda a: jnp.asarray(a, jnp.float32)
    return (bf(t1), f32(b1e), bf(s1e), bf(s1o),
            bf(t2), f32(b2e), bf(s2e), bf(s2o), bf(gc),
            bf(params["fc1_w"]), f32(jnp.asarray(params["fc1_b"])[None, :]),
            bf(params["fc2_w"]), f32(jnp.asarray(params["fc2_b"])[None, :]),
            bf(params["fc3_w"]), f32(jnp.asarray(params["fc3_b"])[None, :]))


# ----------------------------- parameters -----------------------------

def init_params(key):
    """Deterministic PyTorch-default-style uniform init (synthetic weights)."""
    ks = jax.random.split(key, 10)

    def u(k, shape, fan_in):
        bound = 1.0 / math.sqrt(fan_in)
        return jax.random.uniform(k, shape, jnp.float32, -bound, bound)

    return {
        "conv1_w": u(ks[0], (6, 1, 5, 5), 1 * 5 * 5),
        "conv1_b": u(ks[1], (6,), 1 * 5 * 5),
        "conv2_w": u(ks[2], (15, 6, 6, 6), 6 * 6 * 6),
        "conv2_b": u(ks[3], (15,), 6 * 6 * 6),
        "fc1_w": u(ks[4], (15, 32), 15),   # stored already transposed (in, out)
        "fc1_b": u(ks[5], (32,), 15),
        "fc2_w": u(ks[6], (32, 64), 32),
        "fc2_b": u(ks[7], (64,), 32),
        "fc3_w": u(ks[8], (64, 10), 64),
        "fc3_b": u(ks[9], (10,), 64),
    }


if __name__ == "__main__":
    key = jax.random.PRNGKey(0)
    pkey, xkey = jax.random.split(key)
    params = init_params(pkey)
    operands = prepare_operands(params)      # one-time weight re-packing

    # Input: batch=2, 1 channel, 32x32 spatial (NCHW, like the PyTorch module).
    x = jax.random.normal(xkey, (2, 1, 32, 32), dtype=jnp.float32)

    out = jax.jit(mnet_forward)(operands, x)
    out = jax.block_until_ready(out)
    assert out.shape == (2, 10), out.shape
    print("KERNEL_OK")
</pallas_src>

<mosaic_0001>
module attributes {stable_mosaic.version = 11 : i64} {
  func.func @_mnet_kernel(%arg0: i32, %arg1: memref<72x32xf32, #tpu.memory_space<vmem>>, %arg2: memref<5x32x168xbf16, #tpu.memory_space<vmem>>, %arg3: memref<1x168xf32, #tpu.memory_space<vmem>>, %arg4: memref<168x84xbf16, #tpu.memory_space<vmem>>, %arg5: memref<168x84xbf16, #tpu.memory_space<vmem>>, %arg6: memref<32x64xbf16, #tpu.memory_space<vmem>>, %arg7: memref<32x64xbf16, #tpu.memory_space<vmem>>, %arg8: memref<6x84x135xbf16, #tpu.memory_space<vmem>>, %arg9: memref<1x135xf32, #tpu.memory_space<vmem>>, %arg10: memref<135x60xbf16, #tpu.memory_space<vmem>>, %arg11: memref<135x60xbf16, #tpu.memory_space<vmem>>, %arg12: memref<8x32xbf16, #tpu.memory_space<vmem>>, %arg13: memref<8x32xbf16, #tpu.memory_space<vmem>>, %arg14: memref<60x15xbf16, #tpu.memory_space<vmem>>, %arg15: memref<2x8xbf16, #tpu.memory_space<vmem>>, %arg16: memref<15x32xbf16, #tpu.memory_space<vmem>>, %arg17: memref<1x32xf32, #tpu.memory_space<vmem>>, %arg18: memref<32x64xbf16, #tpu.memory_space<vmem>>, %arg19: memref<1x64xf32, #tpu.memory_space<vmem>>, %arg20: memref<64x10xbf16, #tpu.memory_space<vmem>>, %arg21: memref<1x10xf32, #tpu.memory_space<vmem>>, %arg22: memref<2x10xf32, #tpu.memory_space<vmem>>, %arg23: memref<40x84xf32, #tpu.memory_space<vmem>>) attributes {dimension_semantics = [#tpu.dimension_semantics<parallel>], iteration_bounds = array<i64: 1>, scalar_prefetch = 0 : i64, scratch_operands = 1 : i64, tpu.core_type = #tpu.core_type<tc>, window_params = [{transform_indices = @transform_0, window_bounds = array<i64: 72, 32>}, {pipeline_mode = #tpu.pipeline_mode<synchronous>, transform_indices = @transform_1, window_bounds = array<i64: 5, 32, 168>}, {pipeline_mode = #tpu.pipeline_mode<synchronous>, transform_indices = @transform_2, window_bounds = array<i64: 1, 168>}, {pipeline_mode = #tpu.pipeline_mode<synchronous>, transform_indices = @transform_3, window_bounds = array<i64: 168, 84>}, {pipeline_mode = #tpu.pipeline_mode<synchronous>, transform_indices = @transform_4, window_bounds = array<i64: 168, 84>}, {pipeline_mode = #tpu.pipeline_mode<synchronous>, transform_indices = @transform_5, window_bounds = array<i64: 32, 64>}, {pipeline_mode = #tpu.pipeline_mode<synchronous>, transform_indices = @transform_6, window_bounds = array<i64: 32, 64>}, {pipeline_mode = #tpu.pipeline_mode<synchronous>, transform_indices = @transform_7, window_bounds = array<i64: 6, 84, 135>}, {pipeline_mode = #tpu.pipeline_mode<synchronous>, transform_indices = @transform_8, window_bounds = array<i64: 1, 135>}, {pipeline_mode = #tpu.pipeline_mode<synchronous>, transform_indices = @transform_9, window_bounds = array<i64: 135, 60>}, {pipeline_mode = #tpu.pipeline_mode<synchronous>, transform_indices = @transform_10, window_bounds = array<i64: 135, 60>}, {pipeline_mode = #tpu.pipeline_mode<synchronous>, transform_indices = @transform_11, window_bounds = array<i64: 8, 32>}, {pipeline_mode = #tpu.pipeline_mode<synchronous>, transform_indices = @transform_12, window_bounds = array<i64: 8, 32>}, {pipeline_mode = #tpu.pipeline_mode<synchronous>, transform_indices = @transform_13, window_bounds = array<i64: 60, 15>}, {pipeline_mode = #tpu.pipeline_mode<synchronous>, transform_indices = @transform_14, window_bounds = array<i64: 2, 8>}, {pipeline_mode = #tpu.pipeline_mode<synchronous>, transform_indices = @transform_15, window_bounds = array<i64: 15, 32>}, {pipeline_mode = #tpu.pipeline_mode<synchronous>, transform_indices = @transform_16, window_bounds = array<i64: 1, 32>}, {pipeline_mode = #tpu.pipeline_mode<synchronous>, transform_indices = @transform_17, window_bounds = array<i64: 32, 64>}, {pipeline_mode = #tpu.pipeline_mode<synchronous>, transform_indices = @transform_18, window_bounds = array<i64: 1, 64>}, {pipeline_mode = #tpu.pipeline_mode<synchronous>, transform_indices = @transform_19, window_bounds = array<i64: 64, 10>}, {pipeline_mode = #tpu.pipeline_mode<synchronous>, transform_indices = @transform_20, window_bounds = array<i64: 1, 10>}, {transform_indices = @transform_21, window_bounds = array<i64: 2, 10>}]} {
    %c0 = arith.constant 0 : index
    %c0_0 = arith.constant 0 : index
    %0 = vector.load %arg1[%c0, %c0_0] : memref<72x32xf32, #tpu.memory_space<vmem>>, vector<64x32xf32>
    %c0_1 = arith.constant 0 : index
    %c0_2 = arith.constant 0 : index
    %c0_3 = arith.constant 0 : index
    %1 = vector.load %arg2[%c0_1, %c0_2, %c0_3] : memref<5x32x168xbf16, #tpu.memory_space<vmem>>, vector<1x32x168xbf16>
    %2 = vector.shape_cast %1 : vector<1x32x168xbf16> to vector<32x168xbf16>
    %3 = arith.truncf %0 : vector<64x32xf32> to vector<64x32xbf16>
    %cst = arith.constant dense<0.000000e+00> : vector<64x168xf32>
    %4 = tpu.matmul %3, %2, %cst {dimension_numbers = #tpu.dot_dimension_numbers<[1], [0], [0], [1], [0, 0, 1, 1], [], []>} : vector<64x32xbf16>, vector<32x168xbf16>, vector<64x168xf32> -> vector<64x168xf32>
    %c1 = arith.constant 1 : index
    %c0_4 = arith.constant 0 : index
    %5 = vector.load %arg1[%c1, %c0_4] : memref<72x32xf32, #tpu.memory_space<vmem>>, vector<64x32xf32>
    %c1_5 = arith.constant 1 : index
    %c0_6 = arith.constant 0 : index
    %c0_7 = arith.constant 0 : index
    %6 = vector.load %arg2[%c1_5, %c0_6, %c0_7] : memref<5x32x168xbf16, #tpu.memory_space<vmem>>, vector<1x32x168xbf16>
    %7 = vector.shape_cast %6 : vector<1x32x168xbf16> to vector<32x168xbf16>
    %8 = arith.truncf %5 : vector<64x32xf32> to vector<64x32xbf16>
    %cst_8 = arith.constant dense<0.000000e+00> : vector<64x168xf32>
    %9 = tpu.matmul %8, %7, %cst_8 {dimension_numbers = #tpu.dot_dimension_numbers<[1], [0], [0], [1], [0, 0, 1, 1], [], []>} : vector<64x32xbf16>, vector<32x168xbf16>, vector<64x168xf32> -> vector<64x168xf32>
    %10 = arith.addf %4, %9 : vector<64x168xf32>
    %c2 = arith.constant 2 : index
    %c0_9 = arith.constant 0 : index
    %11 = vector.load %arg1[%c2, %c0_9] : memref<72x32xf32, #tpu.memory_space<vmem>>, vector<64x32xf32>
    %c2_10 = arith.constant 2 : index
    %c0_11 = arith.constant 0 : index
    %c0_12 = arith.constant 0 : index
    %12 = vector.load %arg2[%c2_10, %c0_11, %c0_12] : memref<5x32x168xbf16, #tpu.memory_space<vmem>>, vector<1x32x168xbf16>
    %13 = vector.shape_cast %12 : vector<1x32x168xbf16> to vector<32x168xbf16>
    %14 = arith.truncf %11 : vector<64x32xf32> to vector<64x32xbf16>
    %cst_13 = arith.constant dense<0.000000e+00> : vector<64x168xf32>
    %15 = tpu.matmul %14, %13, %cst_13 {dimension_numbers = #tpu.dot_dimension_numbers<[1], [0], [0], [1], [0, 0, 1, 1], [], []>} : vector<64x32xbf16>, vector<32x168xbf16>, vector<64x168xf32> -> vector<64x168xf32>
    %16 = arith.addf %10, %15 : vector<64x168xf32>
    %c3 = arith.constant 3 : index
    %c0_14 = arith.constant 0 : index
    %17 = vector.load %arg1[%c3, %c0_14] : memref<72x32xf32, #tpu.memory_space<vmem>>, vector<64x32xf32>
    %c3_15 = arith.constant 3 : index
    %c0_16 = arith.constant 0 : index
    %c0_17 = arith.constant 0 : index
    %18 = vector.load %arg2[%c3_15, %c0_16, %c0_17] : memref<5x32x168xbf16, #tpu.memory_space<vmem>>, vector<1x32x168xbf16>
    %19 = vector.shape_cast %18 : vector<1x32x168xbf16> to vector<32x168xbf16>
    %20 = arith.truncf %17 : vector<64x32xf32> to vector<64x32xbf16>
    %cst_18 = arith.constant dense<0.000000e+00> : vector<64x168xf32>
    %21 = tpu.matmul %20, %19, %cst_18 {dimension_numbers = #tpu.dot_dimension_numbers<[1], [0], [0], [1], [0, 0, 1, 1], [], []>} : vector<64x32xbf16>, vector<32x168xbf16>, vector<64x168xf32> -> vector<64x168xf32>
    %22 = arith.addf %16, %21 : vector<64x168xf32>
    %c4 = arith.constant 4 : index
    %c0_19 = arith.constant 0 : index
    %23 = vector.load %arg1[%c4, %c0_19] : memref<72x32xf32, #tpu.memory_space<vmem>>, vector<64x32xf32>
    %c4_20 = arith.constant 4 : index
    %c0_21 = arith.constant 0 : index
    %c0_22 = arith.constant 0 : index
    %24 = vector.load %arg2[%c4_20, %c0_21, %c0_22] : memref<5x32x168xbf16, #tpu.memory_space<vmem>>, vector<1x32x168xbf16>
    %25 = vector.shape_cast %24 : vector<1x32x168xbf16> to vector<32x168xbf16>
    %26 = arith.truncf %23 : vector<64x32xf32> to vector<64x32xbf16>
    %cst_23 = arith.constant dense<0.000000e+00> : vector<64x168xf32>
    %27 = tpu.matmul %26, %25, %cst_23 {dimension_numbers = #tpu.dot_dimension_numbers<[1], [0], [0], [1], [0, 0, 1, 1], [], []>} : vector<64x32xbf16>, vector<32x168xbf16>, vector<64x168xf32> -> vector<64x168xf32>
    %28 = arith.addf %22, %27 : vector<64x168xf32>
    %c0_24 = arith.constant 0 : index
    %c0_25 = arith.constant 0 : index
    %29 = vector.load %arg3[%c0_24, %c0_25] : memref<1x168xf32, #tpu.memory_space<vmem>>, vector<1x168xf32>
    %30 = vector.broadcast %29 : vector<1x168xf32> to vector<64x168xf32>
    %31 = arith.addf %28, %30 : vector<64x168xf32>
    %cst_26 = arith.constant 0.000000e+00 : f32
    %32 = vector.broadcast %cst_26 : f32 to vector<64x168xf32>
    %33 = arith.maximumf %31, %32 : vector<64x168xf32>
    %c0_27 = arith.constant 0 : index
    %c0_28 = arith.constant 0 : index
    %34 = vector.load %arg4[%c0_27, %c0_28] : memref<168x84xbf16, #tpu.memory_space<vmem>>, vector<168x84xbf16>
    %35 = arith.truncf %33 : vector<64x168xf32> to vector<64x168xbf16>
    %cst_29 = arith.constant dense<0.000000e+00> : vector<64x84xf32>
    %36 = tpu.matmul %35, %34, %cst_29 {dimension_numbers = #tpu.dot_dimension_numbers<[1], [0], [0], [1], [0, 0, 1, 1], [], []>} : vector<64x168xbf16>, vector<168x84xbf16>, vector<64x84xf32> -> vector<64x84xf32>
    %c0_30 = arith.constant 0 : index
    %c0_31 = arith.constant 0 : index
    %37 = vector.load %arg5[%c0_30, %c0_31] : memref<168x84xbf16, #tpu.memory_space<vmem>>, vector<168x84xbf16>
    %38 = arith.truncf %33 : vector<64x168xf32> to vector<64x168xbf16>
    %cst_32 = arith.constant dense<0.000000e+00> : vector<64x84xf32>
    %39 = tpu.matmul %38, %37, %cst_32 {dimension_numbers = #tpu.dot_dimension_numbers<[1], [0], [0], [1], [0, 0, 1, 1], [], []>} : vector<64x168xbf16>, vector<168x84xbf16>, vector<64x84xf32> -> vector<64x84xf32>
    %40 = arith.maximumf %36, %39 : vector<64x84xf32>
    %c0_33 = arith.constant 0 : index
    %c0_34 = arith.constant 0 : index
    %41 = vector.load %arg6[%c0_33, %c0_34] : memref<32x64xbf16, #tpu.memory_space<vmem>>, vector<32x64xbf16>
    %42 = arith.truncf %40 : vector<64x84xf32> to vector<64x84xbf16>
    %cst_35 = arith.constant dense<0.000000e+00> : vector<32x84xf32>
    %43 = tpu.matmul %41, %42, %cst_35 {dimension_numbers = #tpu.dot_dimension_numbers<[1], [0], [0], [1], [0, 0, 1, 1], [], []>} : vector<32x64xbf16>, vector<64x84xbf16>, vector<32x84xf32> -> vector<32x84xf32>
    %c0_36 = arith.constant 0 : index
    %c0_37 = arith.constant 0 : index
    %44 = vector.load %arg7[%c0_36, %c0_37] : memref<32x64xbf16, #tpu.memory_space<vmem>>, vector<32x64xbf16>
    %45 = arith.truncf %40 : vector<64x84xf32> to vector<64x84xbf16>
    %cst_38 = arith.constant dense<0.000000e+00> : vector<32x84xf32>
    %46 = tpu.matmul %44, %45, %cst_38 {dimension_numbers = #tpu.dot_dimension_numbers<[1], [0], [0], [1], [0, 0, 1, 1], [], []>} : vector<32x64xbf16>, vector<64x84xbf16>, vector<32x84xf32> -> vector<32x84xf32>
    %47 = arith.maximumf %43, %46 : vector<32x84xf32>
    %c0_39 = arith.constant 0 : index
    %c0_40 = arith.constant 0 : index
    %48 = vector.load %arg23[%c0_39, %c0_40] : memref<40x84xf32, #tpu.memory_space<vmem>>, vector<32x84xf32>
    tpu.vector_store %arg23[%c0_39, %c0_40], %47 {strides = array<i32>} : memref<40x84xf32, #tpu.memory_space<vmem>>, vector<32x84xf32>,
    %cst_41 = arith.constant 0.000000e+00 : f32
    %49 = vector.broadcast %cst_41 : f32 to vector<8x84xf32>
    %c32 = arith.constant 32 : index
    %c0_42 = arith.constant 0 : index
    %50 = vector.load %arg23[%c32, %c0_42] : memref<40x84xf32, #tpu.memory_space<vmem>>, vector<8x84xf32>
    tpu.vector_store %arg23[%c32, %c0_42], %49 {strides = array<i32>} : memref<40x84xf32, #tpu.memory_space<vmem>>, vector<8x84xf32>,
    %c0_43 = arith.constant 0 : index
    %c0_44 = arith.constant 0 : index
    %c0_45 = arith.constant 0 : index
    %51 = vector.load %arg8[%c0_43, %c0_44, %c0_45] : memref<6x84x135xbf16, #tpu.memory_space<vmem>>, vector<1x84x135xbf16>
    %52 = vector.shape_cast %51 : vector<1x84x135xbf16> to vector<84x135xbf16>
    %53 = arith.truncf %47 : vector<32x84xf32> to vector<32x84xbf16>
    %cst_46 = arith.constant dense<0.000000e+00> : vector<32x135xf32>
    %54 = tpu.matmul %53, %52, %cst_46 {dimension_numbers = #tpu.dot_dimension_numbers<[1], [0], [0], [1], [0, 0, 1, 1], [], []>} : vector<32x84xbf16>, vector<84x135xbf16>, vector<32x135xf32> -> vector<32x135xf32>
    %c1_47 = arith.constant 1 : index
    %c0_48 = arith.constant 0 : index
    %55 = vector.load %arg23[%c1_47, %c0_48] : memref<40x84xf32, #tpu.memory_space<vmem>>, vector<32x84xf32>
    %c1_49 = arith.constant 1 : index
    %c0_50 = arith.constant 0 : index
    %c0_51 = arith.constant 0 : index
    %56 = vector.load %arg8[%c1_49, %c0_50, %c0_51] : memref<6x84x135xbf16, #tpu.memory_space<vmem>>, vector<1x84x135xbf16>
    %57 = vector.shape_cast %56 : vector<1x84x135xbf16> to vector<84x135xbf16>
    %58 = arith.truncf %55 : vector<32x84xf32> to vector<32x84xbf16>
    %cst_52 = arith.constant dense<0.000000e+00> : vector<32x135xf32>
    %59 = tpu.matmul %58, %57, %cst_52 {dimension_numbers = #tpu.dot_dimension_numbers<[1], [0], [0], [1], [0, 0, 1, 1], [], []>} : vector<32x84xbf16>, vector<84x135xbf16>, vector<32x135xf32> -> vector<32x135xf32>
    %60 = arith.addf %54, %59 : vector<32x135xf32>
    %c2_53 = arith.constant 2 : index
    %c0_54 = arith.constant 0 : index
    %61 = vector.load %arg23[%c2_53, %c0_54] : memref<40x84xf32, #tpu.memory_space<vmem>>, vector<32x84xf32>
    %c2_55 = arith.constant 2 : index
    %c0_56 = arith.constant 0 : index
    %c0_57 = arith.constant 0 : index
    %62 = vector.load %arg8[%c2_55, %c0_56, %c0_57] : memref<6x84x135xbf16, #tpu.memory_space<vmem>>, vector<1x84x135xbf16>
    %63 = vector.shape_cast %62 : vector<1x84x135xbf16> to vector<84x135xbf16>
    %64 = arith.truncf %61 : vector<32x84xf32> to vector<32x84xbf16>
    %cst_58 = arith.constant dense<0.000000e+00> : vector<32x135xf32>
    %65 = tpu.matmul %64, %63, %cst_58 {dimension_numbers = #tpu.dot_dimension_numbers<[1], [0], [0], [1], [0, 0, 1, 1], [], []>} : vector<32x84xbf16>, vector<84x135xbf16>, vector<32x135xf32> -> vector<32x135xf32>
    %66 = arith.addf %60, %65 : vector<32x135xf32>
    %c3_59 = arith.constant 3 : index
    %c0_60 = arith.constant 0 : index
    %67 = vector.load %arg23[%c3_59, %c0_60] : memref<40x84xf32, #tpu.memory_space<vmem>>, vector<32x84xf32>
    %c3_61 = arith.constant 3 : index
    %c0_62 = arith.constant 0 : index
    %c0_63 = arith.constant 0 : index
    %68 = vector.load %arg8[%c3_61, %c0_62, %c0_63] : memref<6x84x135xbf16, #tpu.memory_space<vmem>>, vector<1x84x135xbf16>
    %69 = vector.shape_cast %68 : vector<1x84x135xbf16> to vector<84x135xbf16>
    %70 = arith.truncf %67 : vector<32x84xf32> to vector<32x84xbf16>
    %cst_64 = arith.constant dense<0.000000e+00> : vector<32x135xf32>
    %71 = tpu.matmul %70, %69, %cst_64 {dimension_numbers = #tpu.dot_dimension_numbers<[1], [0], [0], [1], [0, 0, 1, 1], [], []>} : vector<32x84xbf16>, vector<84x135xbf16>, vector<32x135xf32> -> vector<32x135xf32>
    %72 = arith.addf %66, %71 : vector<32x135xf32>
    %c4_65 = arith.constant 4 : index
    %c0_66 = arith.constant 0 : index
    %73 = vector.load %arg23[%c4_65, %c0_66] : memref<40x84xf32, #tpu.memory_space<vmem>>, vector<32x84xf32>
    %c4_67 = arith.constant 4 : index
    %c0_68 = arith.constant 0 : index
    %c0_69 = arith.constant 0 : index
    %74 = vector.load %arg8[%c4_67, %c0_68, %c0_69] : memref<6x84x135xbf16, #tpu.memory_space<vmem>>, vector<1x84x135xbf16>
    %75 = vector.shape_cast %74 : vector<1x84x135xbf16> to vector<84x135xbf16>
    %76 = arith.truncf %73 : vector<32x84xf32> to vector<32x84xbf16>
    %cst_70 = arith.constant dense<0.000000e+00> : vector<32x135xf32>
    %77 = tpu.matmul %76, %75, %cst_70 {dimension_numbers = #tpu.dot_dimension_numbers<[1], [0], [0], [1], [0, 0, 1, 1], [], []>} : vector<32x84xbf16>, vector<84x135xbf16>, vector<32x135xf32> -> vector<32x135xf32>
    %78 = arith.addf %72, %77 : vector<32x135xf32>
    %c5 = arith.constant 5 : index
    %c0_71 = arith.constant 0 : index
    %79 = vector.load %arg23[%c5, %c0_71] : memref<40x84xf32, #tpu.memory_space<vmem>>, vector<32x84xf32>
    %c5_72 = arith.constant 5 : index
    %c0_73 = arith.constant 0 : index
    %c0_74 = arith.constant 0 : index
    %80 = vector.load %arg8[%c5_72, %c0_73, %c0_74] : memref<6x84x135xbf16, #tpu.memory_space<vmem>>, vector<1x84x135xbf16>
    %81 = vector.shape_cast %80 : vector<1x84x135xbf16> to vector<84x135xbf16>
    %82 = arith.truncf %79 : vector<32x84xf32> to vector<32x84xbf16>
    %cst_75 = arith.constant dense<0.000000e+00> : vector<32x135xf32>
    %83 = tpu.matmul %82, %81, %cst_75 {dimension_numbers = #tpu.dot_dimension_numbers<[1], [0], [0], [1], [0, 0, 1, 1], [], []>} : vector<32x84xbf16>, vector<84x135xbf16>, vector<32x135xf32> -> vector<32x135xf32>
    %84 = arith.addf %78, %83 : vector<32x135xf32>
    %c0_76 = arith.constant 0 : index
    %c0_77 = arith.constant 0 : index
    %85 = vector.load %arg9[%c0_76, %c0_77] : memref<1x135xf32, #tpu.memory_space<vmem>>, vector<1x135xf32>
    %86 = vector.broadcast %85 : vector<1x135xf32> to vector<32x135xf32>
    %87 = arith.addf %84, %86 : vector<32x135xf32>
    %cst_78 = arith.constant 0.000000e+00 : f32
    %88 = vector.broadcast %cst_78 : f32 to vector<32x135xf32>
    %89 = arith.maximumf %87, %88 : vector<32x135xf32>
    %c0_79 = arith.constant 0 : index
    %c0_80 = arith.constant 0 : index
    %90 = vector.load %arg10[%c0_79, %c0_80] : memref<135x60xbf16, #tpu.memory_space<vmem>>, vector<135x60xbf16>
    %91 = arith.truncf %89 : vector<32x135xf32> to vector<32x135xbf16>
    %cst_81 = arith.constant dense<0.000000e+00> : vector<32x60xf32>
    %92 = tpu.matmul %91, %90, %cst_81 {dimension_numbers = #tpu.dot_dimension_numbers<[1], [0], [0], [1], [0, 0, 1, 1], [], []>} : vector<32x135xbf16>, vector<135x60xbf16>, vector<32x60xf32> -> vector<32x60xf32>
    %c0_82 = arith.constant 0 : index
    %c0_83 = arith.constant 0 : index
    %93 = vector.load %arg11[%c0_82, %c0_83] : memref<135x60xbf16, #tpu.memory_space<vmem>>, vector<135x60xbf16>
    %94 = arith.truncf %89 : vector<32x135xf32> to vector<32x135xbf16>
    %cst_84 = arith.constant dense<0.000000e+00> : vector<32x60xf32>
    %95 = tpu.matmul %94, %93, %cst_84 {dimension_numbers = #tpu.dot_dimension_numbers<[1], [0], [0], [1], [0, 0, 1, 1], [], []>} : vector<32x135xbf16>, vector<135x60xbf16>, vector<32x60xf32> -> vector<32x60xf32>
    %96 = arith.maximumf %92, %95 : vector<32x60xf32>
    %c0_85 = arith.constant 0 : index
    %c0_86 = arith.constant 0 : index
    %97 = vector.load %arg12[%c0_85, %c0_86] : memref<8x32xbf16, #tpu.memory_space<vmem>>, vector<8x32xbf16>
    %98 = arith.truncf %96 : vector<32x60xf32> to vector<32x60xbf16>
    %cst_87 = arith.constant dense<0.000000e+00> : vector<8x60xf32>
    %99 = tpu.matmul %97, %98, %cst_87 {dimension_numbers = #tpu.dot_dimension_numbers<[1], [0], [0], [1], [0, 0, 1, 1], [], []>} : vector<8x32xbf16>, vector<32x60xbf16>, vector<8x60xf32> -> vector<8x60xf32>
    %c0_88 = arith.constant 0 : index
    %c0_89 = arith.constant 0 : index
    %100 = vector.load %arg13[%c0_88, %c0_89] : memref<8x32xbf16, #tpu.memory_space<vmem>>, vector<8x32xbf16>
    %101 = arith.truncf %96 : vector<32x60xf32> to vector<32x60xbf16>
    %cst_90 = arith.constant dense<0.000000e+00> : vector<8x60xf32>
    %102 = tpu.matmul %100, %101, %cst_90 {dimension_numbers = #tpu.dot_dimension_numbers<[1], [0], [0], [1], [0, 0, 1, 1], [], []>} : vector<8x32xbf16>, vector<32x60xbf16>, vector<8x60xf32> -> vector<8x60xf32>
    %103 = arith.maximumf %99, %102 : vector<8x60xf32>
    %c0_91 = arith.constant 0 : index
    %c0_92 = arith.constant 0 : index
    %104 = vector.load %arg14[%c0_91, %c0_92] : memref<60x15xbf16, #tpu.memory_space<vmem>>, vector<60x15xbf16>
    %105 = arith.truncf %103 : vector<8x60xf32> to vector<8x60xbf16>
    %cst_93 = arith.constant dense<0.000000e+00> : vector<8x15xf32>
    %106 = tpu.matmul %105, %104, %cst_93 {dimension_numbers = #tpu.dot_dimension_numbers<[1], [0], [0], [1], [0, 0, 1, 1], [], []>} : vector<8x60xbf16>, vector<60x15xbf16>, vector<8x15xf32> -> vector<8x15xf32>
    %c0_94 = arith.constant 0 : index
    %c0_95 = arith.constant 0 : index
    %107 = vector.load %arg15[%c0_94, %c0_95] : memref<2x8xbf16, #tpu.memory_space<vmem>>, vector<2x8xbf16>
    %108 = arith.truncf %106 : vector<8x15xf32> to vector<8x15xbf16>
    %cst_96 = arith.constant dense<0.000000e+00> : vector<2x15xf32>
    %109 = tpu.matmul %107, %108, %cst_96 {dimension_numbers = #tpu.dot_dimension_numbers<[1], [0], [0], [1], [0, 0, 1, 1], [], []>} : vector<2x8xbf16>, vector<8x15xbf16>, vector<2x15xf32> -> vector<2x15xf32>
    %c0_97 = arith.constant 0 : index
    %c0_98 = arith.constant 0 : index
    %110 = vector.load %arg16[%c0_97, %c0_98] : memref<15x32xbf16, #tpu.memory_space<vmem>>, vector<15x32xbf16>
    %111 = arith.truncf %109 : vector<2x15xf32> to vector<2x15xbf16>
    %cst_99 = arith.constant dense<0.000000e+00> : vector<2x32xf32>
    %112 = tpu.matmul %111, %110, %cst_99 {dimension_numbers = #tpu.dot_dimension_numbers<[1], [0], [0], [1], [0, 0, 1, 1], [], []>} : vector<2x15xbf16>, vector<15x32xbf16>, vector<2x32xf32> -> vector<2x32xf32>
    %c0_100 = arith.constant 0 : index
    %c0_101 = arith.constant 0 : index
    %113 = vector.load %arg17[%c0_100, %c0_101] : memref<1x32xf32, #tpu.memory_space<vmem>>, vector<1x32xf32>
    %114 = vector.broadcast %113 : vector<1x32xf32> to vector<2x32xf32>
    %115 = arith.addf %112, %114 : vector<2x32xf32>
    %cst_102 = arith.constant 0.000000e+00 : f32
    %116 = vector.broadcast %cst_102 : f32 to vector<2x32xf32>
    %117 = arith.maximumf %115, %116 : vector<2x32xf32>
    %c0_103 = arith.constant 0 : index
    %c0_104 = arith.constant 0 : index
    %118 = vector.load %arg18[%c0_103, %c0_104] : memref<32x64xbf16, #tpu.memory_space<vmem>>, vector<32x64xbf16>
    %119 = arith.truncf %117 : vector<2x32xf32> to vector<2x32xbf16>
    %cst_105 = arith.constant dense<0.000000e+00> : vector<2x64xf32>
    %120 = tpu.matmul %119, %118, %cst_105 {dimension_numbers = #tpu.dot_dimension_numbers<[1], [0], [0], [1], [0, 0, 1, 1], [], []>} : vector<2x32xbf16>, vector<32x64xbf16>, vector<2x64xf32> -> vector<2x64xf32>
    %c0_106 = arith.constant 0 : index
    %c0_107 = arith.constant 0 : index
    %121 = vector.load %arg19[%c0_106, %c0_107] : memref<1x64xf32, #tpu.memory_space<vmem>>, vector<1x64xf32>
    %122 = vector.broadcast %121 : vector<1x64xf32> to vector<2x64xf32>
    %123 = arith.addf %120, %122 : vector<2x64xf32>
    %cst_108 = arith.constant 0.000000e+00 : f32
    %124 = vector.broadcast %cst_108 : f32 to vector<2x64xf32>
    %125 = arith.maximumf %123, %124 : vector<2x64xf32>
    %c0_109 = arith.constant 0 : index
    %c0_110 = arith.constant 0 : index
    %126 = vector.load %arg20[%c0_109, %c0_110] : memref<64x10xbf16, #tpu.memory_space<vmem>>, vector<64x10xbf16>
    %127 = arith.truncf %125 : vector<2x64xf32> to vector<2x64xbf16>
    %cst_111 = arith.constant dense<0.000000e+00> : vector<2x10xf32>
    %128 = tpu.matmul %127, %126, %cst_111 {dimension_numbers = #tpu.dot_dimension_numbers<[1], [0], [0], [1], [0, 0, 1, 1], [], []>} : vector<2x64xbf16>, vector<64x10xbf16>, vector<2x10xf32> -> vector<2x10xf32>
    %c0_112 = arith.constant 0 : index
    %c0_113 = arith.constant 0 : index
    %129 = vector.load %arg21[%c0_112, %c0_113] : memref<1x10xf32, #tpu.memory_space<vmem>>, vector<1x10xf32>
    %130 = vector.broadcast %129 : vector<1x10xf32> to vector<2x10xf32>
    %131 = arith.addf %128, %130 : vector<2x10xf32>
    %c0_114 = arith.constant 0 : index
    %c0_115 = arith.constant 0 : index
    %132 = vector.load %arg22[%c0_114, %c0_115] : memref<2x10xf32, #tpu.memory_space<vmem>>, vector<2x10xf32>
    tpu.vector_store %arg22[%c0_114, %c0_115], %131 {strides = array<i32>} : memref<2x10xf32, #tpu.memory_space<vmem>>, vector<2x10xf32>,
    return
  }
  func.func @transform_0(%arg0: i32) -> (i32, i32) {
    %c0_i32 = arith.constant 0 : i32
    %c0_i32_0 = arith.constant 0 : i32
    return %arg0, %c0_i32 : i32, i32
  }
  func.func @transform_1(%arg0: i32) -> (i32, i32, i32) {
    %c0_i32 = arith.constant 0 : i32
    %c0_i32_0 = arith.constant 0 : i32
    %c0_i32_1 = arith.constant 0 : i32
    %c0_i32_2 = arith.constant 0 : i32
    return %c0_i32, %c0_i32_0, %c0_i32_1 : i32, i32, i32
  }
  func.func @transform_2(%arg0: i32) -> (i32, i32) {
    %c0_i32 = arith.constant 0 : i32
    %c0_i32_0 = arith.constant 0 : i32
    %c0_i32_1 = arith.constant 0 : i32
    return %c0_i32, %c0_i32_0 : i32, i32
  }
  func.func @transform_3(%arg0: i32) -> (i32, i32) {
    %c0_i32 = arith.constant 0 : i32
    %c0_i32_0 = arith.constant 0 : i32
    %c0_i32_1 = arith.constant 0 : i32
    return %c0_i32, %c0_i32_0 : i32, i32
  }
  func.func @transform_4(%arg0: i32) -> (i32, i32) {
    %c0_i32 = arith.constant 0 : i32
    %c0_i32_0 = arith.constant 0 : i32
    %c0_i32_1 = arith.constant 0 : i32
    return %c0_i32, %c0_i32_0 : i32, i32
  }
  func.func @transform_5(%arg0: i32) -> (i32, i32) {
    %c0_i32 = arith.constant 0 : i32
    %c0_i32_0 = arith.constant 0 : i32
    %c0_i32_1 = arith.constant 0 : i32
    return %c0_i32, %c0_i32_0 : i32, i32
  }
  func.func @transform_6(%arg0: i32) -> (i32, i32) {
    %c0_i32 = arith.constant 0 : i32
    %c0_i32_0 = arith.constant 0 : i32
    %c0_i32_1 = arith.constant 0 : i32
    return %c0_i32, %c0_i32_0 : i32, i32
  }
  func.func @transform_7(%arg0: i32) -> (i32, i32, i32) {
    %c0_i32 = arith.constant 0 : i32
    %c0_i32_0 = arith.constant 0 : i32
    %c0_i32_1 = arith.constant 0 : i32
    %c0_i32_2 = arith.constant 0 : i32
    return %c0_i32, %c0_i32_0, %c0_i32_1 : i32, i32, i32
  }
  func.func @transform_8(%arg0: i32) -> (i32, i32) {
    %c0_i32 = arith.constant 0 : i32
    %c0_i32_0 = arith.constant 0 : i32
    %c0_i32_1 = arith.constant 0 : i32
    return %c0_i32, %c0_i32_0 : i32, i32
  }
  func.func @transform_9(%arg0: i32) -> (i32, i32) {
    %c0_i32 = arith.constant 0 : i32
    %c0_i32_0 = arith.constant 0 : i32
    %c0_i32_1 = arith.constant 0 : i32
    return %c0_i32, %c0_i32_0 : i32, i32
  }
  func.func @transform_10(%arg0: i32) -> (i32, i32) {
    %c0_i32 = arith.constant 0 : i32
    %c0_i32_0 = arith.constant 0 : i32
    %c0_i32_1 = arith.constant 0 : i32
    return %c0_i32, %c0_i32_0 : i32, i32
  }
  func.func @transform_11(%arg0: i32) -> (i32, i32) {
    %c0_i32 = arith.constant 0 : i32
    %c0_i32_0 = arith.constant 0 : i32
    %c0_i32_1 = arith.constant 0 : i32
    return %c0_i32, %c0_i32_0 : i32, i32
  }
  func.func @transform_12(%arg0: i32) -> (i32, i32) {
    %c0_i32 = arith.constant 0 : i32
    %c0_i32_0 = arith.constant 0 : i32
    %c0_i32_1 = arith.constant 0 : i32
    return %c0_i32, %c0_i32_0 : i32, i32
  }
  func.func @transform_13(%arg0: i32) -> (i32, i32) {
    %c0_i32 = arith.constant 0 : i32
    %c0_i32_0 = arith.constant 0 : i32
    %c0_i32_1 = arith.constant 0 : i32
    return %c0_i32, %c0_i32_0 : i32, i32
  }
  func.func @transform_14(%arg0: i32) -> (i32, i32) {
    %c0_i32 = arith.constant 0 : i32
    %c0_i32_0 = arith.constant 0 : i32
    %c0_i32_1 = arith.constant 0 : i32
    return %c0_i32, %c0_i32_0 : i32, i32
  }
  func.func @transform_15(%arg0: i32) -> (i32, i32) {
    %c0_i32 = arith.constant 0 : i32
    %c0_i32_0 = arith.constant 0 : i32
    %c0_i32_1 = arith.constant 0 : i32
    return %c0_i32, %c0_i32_0 : i32, i32
  }
  func.func @transform_16(%arg0: i32) -> (i32, i32) {
    %c0_i32 = arith.constant 0 : i32
    %c0_i32_0 = arith.constant 0 : i32
    %c0_i32_1 = arith.constant 0 : i32
    return %c0_i32, %c0_i32_0 : i32, i32
  }
  func.func @transform_17(%arg0: i32) -> (i32, i32) {
    %c0_i32 = arith.constant 0 : i32
    %c0_i32_0 = arith.constant 0 : i32
    %c0_i32_1 = arith.constant 0 : i32
    return %c0_i32, %c0_i32_0 : i32, i32
  }
  func.func @transform_18(%arg0: i32) -> (i32, i32) {
    %c0_i32 = arith.constant 0 : i32
    %c0_i32_0 = arith.constant 0 : i32
    %c0_i32_1 = arith.constant 0 : i32
    return %c0_i32, %c0_i32_0 : i32, i32
  }
  func.func @transform_19(%arg0: i32) -> (i32, i32) {
    %c0_i32 = arith.constant 0 : i32
    %c0_i32_0 = arith.constant 0 : i32
    %c0_i32_1 = arith.constant 0 : i32
    return %c0_i32, %c0_i32_0 : i32, i32
  }
  func.func @transform_20(%arg0: i32) -> (i32, i32) {
    %c0_i32 = arith.constant 0 : i32
    %c0_i32_0 = arith.constant 0 : i32
    %c0_i32_1 = arith.constant 0 : i32
    return %c0_i32, %c0_i32_0 : i32, i32
  }
  func.func @transform_21(%arg0: i32) -> (i32, i32) {
    %c0_i32 = arith.constant 0 : i32
    %c0_i32_0 = arith.constant 0 : i32
    return %arg0, %c0_i32 : i32, i32
  }
}

</mosaic_0001>

<llo_original>
// kernel: mnet_forward.1
$region0: #{mnet_forward.1}
  #allocation0 [shape = 'u32[]', space=smem, size = 0x4, offset = 0x4, fixed_abs, tag = 'smem constant byte address 0x4 - core index']
  #allocation1 [shape = 'u32[72,128]{1,0:T(1,128)}', space=vmem, size = 0x9000, scoped, tag = 'internal scratch']
  #allocation2 [shape = 'f32[40,84]{1,0:T(8,128)}', space=vmem, size = 0x5000, scoped, tag = 'scratch operand']
  %s0 = inlined_call_operand.vmem [shape: f32[72,32], index: 0, kind: input, shape index: {}]
  %s1 = inlined_call_operand.vmem [shape: bf16[5,32,168], index: 1, kind: input, shape index: {}]
  %s2 = inlined_call_operand.vmem [shape: f32[1,168], index: 2, kind: input, shape index: {}]
  %s3 = inlined_call_operand.vmem [shape: bf16[168,84], index: 3, kind: input, shape index: {}]
  %s4 = inlined_call_operand.vmem [shape: bf16[168,84], index: 4, kind: input, shape index: {}]
  %s5 = inlined_call_operand.vmem [shape: bf16[32,64], index: 5, kind: input, shape index: {}]
  %s6 = inlined_call_operand.vmem [shape: bf16[32,64], index: 6, kind: input, shape index: {}]
  %s7 = inlined_call_operand.vmem [shape: bf16[6,84,135], index: 7, kind: input, shape index: {}]
  %s8 = inlined_call_operand.vmem [shape: f32[1,135], index: 8, kind: input, shape index: {}]
  %s9 = inlined_call_operand.vmem [shape: bf16[135,60], index: 9, kind: input, shape index: {}]
  %s10 = inlined_call_operand.vmem [shape: bf16[135,60], index: 10, kind: input, shape index: {}]
  %s11 = inlined_call_operand.vmem [shape: bf16[8,32], index: 11, kind: input, shape index: {}]
  %s12 = inlined_call_operand.vmem [shape: bf16[8,32], index: 12, kind: input, shape index: {}]
  %s13 = inlined_call_operand.vmem [shape: bf16[60,15], index: 13, kind: input, shape index: {}]
  %s14 = inlined_call_operand.vmem [shape: bf16[2,8], index: 14, kind: input, shape index: {}]
  %s15 = inlined_call_operand.vmem [shape: bf16[15,32], index: 15, kind: input, shape index: {}]
  %s16 = inlined_call_operand.vmem [shape: f32[1,32], index: 16, kind: input, shape index: {}]
  %s17 = inlined_call_operand.vmem [shape: bf16[32,64], index: 17, kind: input, shape index: {}]
  %s18 = inlined_call_operand.vmem [shape: f32[1,64], index: 18, kind: input, shape index: {}]
  %s19 = inlined_call_operand.vmem [shape: bf16[64,10], index: 19, kind: input, shape index: {}]
  %s20 = inlined_call_operand.vmem [shape: f32[1,10], index: 20, kind: input, shape index: {}]
  %s21 = inlined_call_operand.hbm [shape: f32[2,10], index: 21, kind: output, shape index: {}]
  %s22 = sld [smem:[#allocation0]]
  $region94: #{mnet_forward.1} parent=0
    _
  %s24 = ssub.s32 1, %s22
  %s25 = scalar_select 0, %s24, %s22
  $region1: #{mnet_forward.1} parent=0
    #allocation3 [shape = 'u8[1024]{0}', space=vmem, size = 0x400, scoped, tag = 'output window, operand 0, single buffered']
    #allocation4 [shape = 's32[1]{0}', space=sflag, size = 0x4, scoped, tag = 'scoped memory for mnet_forward.1']
    %26 = vsyncpa [#allocation4], 0
    // Predicated region
    $region2: #{mnet_forward.1} parent=1 // pred_check
      _
    $region3: #{mnet_forward.1} parent=1 // pred_check_branch
      %28 = sbr.rel (0) target = $region5
    $region4: #{mnet_forward.1} parent=1 // pred_region
      _
    $region5: #{mnet_forward.1} parent=1 // pred_fallthru
      _
    // Predicated region
    $region6: #{mnet_forward.1} parent=1 // pred_check
      _
    $region7: #{mnet_forward.1} parent=1 // pred_check_branch
      %30 = sbr.rel (0) target = $region9
    $region8: #{mnet_forward.1} parent=1 // pred_region
      _
    $region9: #{mnet_forward.1} parent=1 // pred_fallthru
      _
    // Predicated region
    $region10: #{mnet_forward.1} parent=1 // pred_check
      _
    $region11: #{mnet_forward.1} parent=1 // pred_check_branch
      %32 = sbr.rel (0) target = $region13
    $region12: #{mnet_forward.1} parent=1 // pred_region
      _
    $region13: #{mnet_forward.1} parent=1 // pred_fallthru
      _
    // Predicated region
    $region14: #{mnet_forward.1} parent=1 // pred_check
      _
    $region15: #{mnet_forward.1} parent=1 // pred_check_branch
      %34 = sbr.rel (0) target = $region17
    $region16: #{mnet_forward.1} parent=1 // pred_region
      _
    $region17: #{mnet_forward.1} parent=1 // pred_fallthru
      _
    // Predicated region
    $region18: #{mnet_forward.1} parent=1 // pred_check
      _
    $region19: #{mnet_forward.1} parent=1 // pred_check_branch
      %36 = sbr.rel (0) target = $region21
    $region20: #{mnet_forward.1} parent=1 // pred_region
      _
    $region21: #{mnet_forward.1} parent=1 // pred_fallthru
      _
    // Predicated region
    $region22: #{mnet_forward.1} parent=1 // pred_check
      _
    $region23: #{mnet_forward.1} parent=1 // pred_check_branch
      %38 = sbr.rel (0) target = $region25
    $region24: #{mnet_forward.1} parent=1 // pred_region
      _
    $region25: #{mnet_forward.1} parent=1 // pred_fallthru
      _
    // Predicated region
    $region26: #{mnet_forward.1} parent=1 // pred_check
      _
    $region27: #{mnet_forward.1} parent=1 // pred_check_branch
      %40 = sbr.rel (0) target = $region29
    $region28: #{mnet_forward.1} parent=1 // pred_region
      _
    $region29: #{mnet_forward.1} parent=1 // pred_fallthru
      _
    // Predicated region
    $region30: #{mnet_forward.1} parent=1 // pred_check
      _
    $region31: #{mnet_forward.1} parent=1 // pred_check_branch
      %42 = sbr.rel (0) target = $region33
    $region32: #{mnet_forward.1} parent=1 // pred_region
      _
    $region33: #{mnet_forward.1} parent=1 // pred_fallthru
      _
    // Predicated region
    $region34: #{mnet_forward.1} parent=1 // pred_check
      _
    $region35: #{mnet_forward.1} parent=1 // pred_check_branch
      %44 = sbr.rel (0) target = $region37
    $region36: #{mnet_forward.1} parent=1 // pred_region
      _
    $region37: #{mnet_forward.1} parent=1 // pred_fallthru
      _
    // Predicated region
    $region38: #{mnet_forward.1} parent=1 // pred_check
      _
    $region39: #{mnet_forward.1} parent=1 // pred_check_branch
      %46 = sbr.rel (0) target = $region41
    $region40: #{mnet_forward.1} parent=1 // pred_region
      _
    $region41: #{mnet_forward.1} parent=1 // pred_fallthru
      _
    // Predicated region
    $region42: #{mnet_forward.1} parent=1 // pred_check
      _
    $region43: #{mnet_forward.1} parent=1 // pred_check_branch
      %48 = sbr.rel (0) target = $region45
    $region44: #{mnet_forward.1} parent=1 // pred_region
      _
    $region45: #{mnet_forward.1} parent=1 // pred_fallthru
      _
    // Predicated region
    $region46: #{mnet_forward.1} parent=1 // pred_check
      _
    $region47: #{mnet_forward.1} parent=1 // pred_check_branch
      %50 = sbr.rel (0) target = $region49
    $region48: #{mnet_forward.1} parent=1 // pred_region
      _
    $region49: #{mnet_forward.1} parent=1 // pred_fallthru
      _
    // Predicated region
    $region50: #{mnet_forward.1} parent=1 // pred_check
      _
    $region51: #{mnet_forward.1} parent=1 // pred_check_branch
      %52 = sbr.rel (0) target = $region53
    $region52: #{mnet_forward.1} parent=1 // pred_region
      _
    $region53: #{mnet_forward.1} parent=1 // pred_fallthru
      _
    // Predicated region
    $region54: #{mnet_forward.1} parent=1 // pred_check
      _
    $region55: #{mnet_forward.1} parent=1 // pred_check_branch
      %54 = sbr.rel (0) target = $region57
    $region56: #{mnet_forward.1} parent=1 // pred_region
      _
    $region57: #{mnet_forward.1} parent=1 // pred_fallthru
      _
    // Predicated region
    $region58: #{mnet_forward.1} parent=1 // pred_check
      _
    $region59: #{mnet_forward.1} parent=1 // pred_check_branch
      %56 = sbr.rel (0) target = $region61
    $region60: #{mnet_forward.1} parent=1 // pred_region
      _
    $region61: #{mnet_forward.1} parent=1 // pred_fallthru
      _
    // Predicated region
    $region62: #{mnet_forward.1} parent=1 // pred_check
      _
    $region63: #{mnet_forward.1} parent=1 // pred_check_branch
      %58 = sbr.rel (0) target = $region65
    $region64: #{mnet_forward.1} parent=1 // pred_region
      _
    $region65: #{mnet_forward.1} parent=1 // pred_fallthru
      _
    // Predicated region
    $region66: #{mnet_forward.1} parent=1 // pred_check
      _
    $region67: #{mnet_forward.1} parent=1 // pred_check_branch
      %60 = sbr.rel (0) target = $region69
    $region68: #{mnet_forward.1} parent=1 // pred_region
      _
    $region69: #{mnet_forward.1} parent=1 // pred_fallthru
      _
    // Predicated region
    $region70: #{mnet_forward.1} parent=1 // pred_check
      _
    $region71: #{mnet_forward.1} parent=1 // pred_check_branch
      %62 = sbr.rel (0) target = $region73
    $region72: #{mnet_forward.1} parent=1 // pred_region
      _
    $region73: #{mnet_forward.1} parent=1 // pred_fallthru
      _
    // Predicated region
    $region74: #{mnet_forward.1} parent=1 // pred_check
      _
    $region75: #{mnet_forward.1} parent=1 // pred_check_branch
      %64 = sbr.rel (0) target = $region77
    $region76: #{mnet_forward.1} parent=1 // pred_region
      _
    $region77: #{mnet_forward.1} parent=1 // pred_fallthru
      _
    // Predicated region
    $region78: #{mnet_forward.1} parent=1 // pred_check
      _
    $region79: #{mnet_forward.1} parent=1 // pred_check_branch
      %66 = sbr.rel (0) target = $region81
    $region80: #{mnet_forward.1} parent=1 // pred_region
      _
    $region81: #{mnet_forward.1} parent=1 // pred_fallthru
      _
    // Predicated region
    $region82: #{mnet_forward.1} parent=1 // pred_check
      _
    $region83: #{mnet_forward.1} parent=1 // pred_check_branch
      %68 = sbr.rel (0) target = $region85
    $region84: #{mnet_forward.1} parent=1 // pred_region
      _
    $region85: #{mnet_forward.1} parent=1 // pred_fallthru
      _
    %v70 = vld [vmem:[%s0] sm:$0xff]
    %v71 = vld [vmem:[%s0 + $0x8] sm:$0xff]
    %v72 = vld [vmem:[%s0 + $0x10] sm:$0xff]
    %v73 = vld [vmem:[%s0 + $0x18] sm:$0xff]
    %v74 = vld [vmem:[%s0 + $0x20] sm:$0xff]
    %v75 = vld [vmem:[%s0 + $0x28] sm:$0xff]
    %v76 = vld [vmem:[%s0 + $0x30] sm:$0xff]
    %v77 = vld [vmem:[%s0 + $0x38] sm:$0xff]
    %v78 = vld [vmem:[%s1] sm:$0xff]
    %v79 = vld [vmem:[%s1 + $0x8] sm:$0xff]
    %v80 = vld [vmem:[%s1 + $0x10] sm:$0xff]
    %v81 = vld [vmem:[%s1 + $0x18] sm:$0xff]
    %v82 = vpack.c.bf16 %v71, %v70
    %v83 = vpack.c.bf16 %v73, %v72
    %v84 = vpack.c.bf16 %v75, %v74
    %v85 = vpack.c.bf16 %v77, %v76
    %v86 = vld [vmem:[%s0 + $0x1] sm:$0xff]
    %v87 = vld [vmem:[%s0 + $0x9] sm:$0xff]
    %v88 = vld [vmem:[%s0 + $0x11] sm:$0xff]
    %v89 = vld [vmem:[%s0 + $0x19] sm:$0xff]
    %v90 = vld [vmem:[%s0 + $0x21] sm:$0xff]
    %v91 = vld [vmem:[%s0 + $0x29] sm:$0xff]
    %v92 = vld [vmem:[%s0 + $0x31] sm:$0xff]
    %v93 = vld [vmem:[%s0 + $0x39] sm:$0xff]
    %s94 = scalar_lea.vmem %s1, 32
    %v95 = vld [vmem:[%s94] sm:$0xff]
    %v96 = vld [vmem:[%s94 + $0x8] sm:$0xff]
    %v97 = vld [vmem:[%s94 + $0x10] sm:$0xff]
    %v98 = vld [vmem:[%s94 + $0x18] sm:$0xff]
    %v99 = vpack.c.bf16 %v87, %v86
    %v100 = vpack.c.bf16 %v89, %v88
    %v101 = vpack.c.bf16 %v91, %v90
    %v102 = vpack.c.bf16 %v93, %v92
    %v107 = vunpack.c.l.b16 %v95
    %v108 = vunpack.c.h.b16 %v95
    %v109 = vunpack.c.l.b16 %v96
    %v110 = vunpack.c.h.b16 %v96
    %v111 = vunpack.c.l.b16 %v97
    %v112 = vunpack.c.h.b16 %v97
    %v113 = vunpack.c.l.b16 %v98
    %v114 = vunpack.c.h.b16 %v98
    %v115 = vpack.c.b16 %v109, %v107
    %v116 = vpack.c.b16 %v110, %v108
    %v117 = vpack.c.b16 %v113, %v111
    %v118 = vpack.c.b16 %v114, %v112
    %vm123 = vcmask 261120
    %v125 = vsel %vm123, %v99, 0
    %v128 = vsel %vm123, %v100, 0
    %v131 = vsel %vm123, %v101, 0
    %v134 = vsel %vm123, %v102, 0
    %136 = vmatpush.bf16.msra.mxu0 0
    %137 = vmatpush.bf16.msra.mxu0 0
    %138 = vmatpush.bf16.msra.mxu0 0
    %139 = vmatpush.bf16.msra.mxu0 0
    %140 = vmatpush.bf16.msra.mxu0 0
    %141 = vmatpush.bf16.msra.mxu0 0
    %142 = vmatpush.bf16.msra.mxu0 %v117
    %143 = vmatpush.bf16.msra.mxu0 %v115
    %144 = vmatmul.bf16.gmra.mxu0 %v125
    %v145 = vpop.f32.mrf.mxu0
    %v146 = vadd.f32 0.0, %v145
    %v147 = vpop.f32.mrf.mxu0
    %v148 = vadd.f32 0.0, %v147
    %149 = vmatmul.bf16.gmra.mxu0 %v128
    %v150 = vpop.f32.mrf.mxu0
    %v151 = vadd.f32 0.0, %v150
    %v152 = vpop.f32.mrf.mxu0
    %v153 = vadd.f32 0.0, %v152
    %154 = vmatmul.bf16.gmra.mxu0 %v131
    %v155 = vpop.f32.mrf.mxu0
    %v156 = vadd.f32 0.0, %v155
    %v157 = vpop.f32.mrf.mxu0
    %v158 = vadd.f32 0.0, %v157
    %159 = vmatmul.bf16.gmra.mxu0 %v134
    %v160 = vpop.f32.mrf.mxu0
    %v161 = vadd.f32 0.0, %v160
    %v162 = vpop.f32.mrf.mxu0
    %v163 = vadd.f32 0.0, %v162
    %164 = vdwg.mxu0
    %165 = vmatpush.bf16.msra.mxu0 0
    %166 = vmatpush.bf16.msra.mxu0 0
    %167 = vmatpush.bf16.msra.mxu0 0
    %168 = vmatpush.bf16.msra.mxu0 0
    %169 = vmatpush.bf16.msra.mxu0 0
    %170 = vmatpush.bf16.msra.mxu0 0
    %171 = vmatpush.bf16.msra.mxu0 %v118
    %172 = vmatpush.bf16.msra.mxu0 %v116
    %173 = vmatmul.bf16.gmra.mxu0 %v125
    %v174 = vpop.f32.mrf.mxu0
    %v175 = vadd.f32 0.0, %v174
    %v176 = vpop.f32.mrf.mxu0
    %v177 = vadd.f32 0.0, %v176
    %178 = vmatmul.bf16.gmra.mxu0 %v128
    %v179 = vpop.f32.mrf.mxu0
    %v180 = vadd.f32 0.0, %v179
    %v181 = vpop.f32.mrf.mxu0
    %v182 = vadd.f32 0.0, %v181
    %183 = vmatmul.bf16.gmra.mxu0 %v131
    %v184 = vpop.f32.mrf.mxu0
    %v185 = vadd.f32 0.0, %v184
    %v186 = vpop.f32.mrf.mxu0
    %v187 = vadd.f32 0.0, %v186
    %188 = vmatmul.bf16.gmra.mxu0 %v134
    %v189 = vpop.f32.mrf.mxu0
    %v190 = vadd.f32 0.0, %v189
    %v191 = vpop.f32.mrf.mxu0
    %v192 = vadd.f32 0.0, %v191
    %193 = vdwg.mxu0
    %v198 = vunpack.c.l.b16 %v78
    %v199 = vunpack.c.h.b16 %v78
    %v200 = vunpack.c.l.b16 %v79
    %v201 = vunpack.c.h.b16 %v79
    %v202 = vunpack.c.l.b16 %v80
    %v203 = vunpack.c.h.b16 %v80
    %v204 = vunpack.c.l.b16 %v81
    %v205 = vunpack.c.h.b16 %v81
    %v206 = vpack.c.b16 %v200, %v198
    %v207 = vpack.c.b16 %v201, %v199
    %v208 = vpack.c.b16 %v204, %v202
    %v209 = vpack.c.b16 %v205, %v203
    %v215 = vsel %vm123, %v82, 0
    %v218 = vsel %vm123, %v83, 0
    %v221 = vsel %vm123, %v84, 0
    %v224 = vsel %vm123, %v85, 0
    %226 = vmatpush.bf16.msra.mxu0 0
    %227 = vmatpush.bf16.msra.mxu0 0
    %228 = vmatpush.bf16.msra.mxu0 0
    %229 = vmatpush.bf16.msra.mxu0 0
    %230 = vmatpush.bf16.msra.mxu0 0
    %231 = vmatpush.bf16.msra.mxu0 0
    %232 = vmatpush.bf16.msra.mxu0 %v208
    %233 = vmatpush.bf16.msra.mxu0 %v206
    %234 = vmatmul.bf16.gmra.mxu0 %v215
    %v235 = vpop.f32.mrf.mxu0
    %v236 = vadd.f32 %v146, %v235
    %v237 = vpop.f32.mrf.mxu0
    %v238 = vadd.f32 %v148, %v237
    %239 = vmatmul.bf16.gmra.mxu0 %v218
    %v240 = vpop.f32.mrf.mxu0
    %v241 = vadd.f32 %v151, %v240
    %v242 = vpop.f32.mrf.mxu0
    %v243 = vadd.f32 %v153, %v242
    %244 = vmatmul.bf16.gmra.mxu0 %v221
    %v245 = vpop.f32.mrf.mxu0
    %v246 = vadd.f32 %v156, %v245
    %v247 = vpop.f32.mrf.mxu0
    %v248 = vadd.f32 %v158, %v247
    %249 = vmatmul.bf16.gmra.mxu0 %v224
    %v250 = vpop.f32.mrf.mxu0
    %v251 = vadd.f32 %v161, %v250
    %v252 = vpop.f32.mrf.mxu0
    %v253 = vadd.f32 %v163, %v252
    %254 = vdwg.mxu0
    %255 = vmatpush.bf16.msra.mxu0 0
    %256 = vmatpush.bf16.msra.mxu0 0
    %257 = vmatpush.bf16.msra.mxu0 0
    %258 = vmatpush.bf16.msra.mxu0 0
    %259 = vmatpush.bf16.msra.mxu0 0
    %260 = vmatpush.bf16.msra.mxu0 0
    %261 = vmatpush.bf16.msra.mxu0 %v209
    %262 = vmatpush.bf16.msra.mxu0 %v207
    %263 = vmatmul.bf16.gmra.mxu0 %v215
    %v264 = vpop.f32.mrf.mxu0
    %v265 = vadd.f32 %v175, %v264
    %v266 = vpop.f32.mrf.mxu0
    %v267 = vadd.f32 %v177, %v266
    %268 = vmatmul.bf16.gmra.mxu0 %v218
    %v269 = vpop.f32.mrf.mxu0
    %v270 = vadd.f32 %v180, %v269
    %v271 = vpop.f32.mrf.mxu0
    %v272 = vadd.f32 %v182, %v271
    %273 = vmatmul.bf16.gmra.mxu0 %v221
    %v274 = vpop.f32.mrf.mxu0
    %v275 = vadd.f32 %v185, %v274
    %v276 = vpop.f32.mrf.mxu0
    %v277 = vadd.f32 %v187, %v276
    %278 = vmatmul.bf16.gmra.mxu0 %v224
    %v279 = vpop.f32.mrf.mxu0
    %v280 = vadd.f32 %v190, %v279
    %v281 = vpop.f32.mrf.mxu0
    %v282 = vadd.f32 %v192, %v281
    %283 = vdwg.mxu0
    %v284 = vld [vmem:[%s0 + $0x2] sm:$0xff]
    %v285 = vld [vmem:[%s0 + $0xa] sm:$0xff]
    %v286 = vld [vmem:[%s0 + $0x12] sm:$0xff]
    %v287 = vld [vmem:[%s0 + $0x1a] sm:$0xff]
    %v288 = vld [vmem:[%s0 + $0x22] sm:$0xff]
    %v289 = vld [vmem:[%s0 + $0x2a] sm:$0xff]
    %v290 = vld [vmem:[%s0 + $0x32] sm:$0xff]
    %v291 = vld [vmem:[%s0 + $0x3a] sm:$0xff]
    %s292 = scalar_lea.vmem %s1, 64
    %v293 = vld [vmem:[%s292] sm:$0xff]
    %v294 = vld [vmem:[%s292 + $0x8] sm:$0xff]
    %v295 = vld [vmem:[%s292 + $0x10] sm:$0xff]
    %v296 = vld [vmem:[%s292 + $0x18] sm:$0xff]
    %v297 = vpack.c.bf16 %v285, %v284
    %v298 = vpack.c.bf16 %v287, %v286
    %v299 = vpack.c.bf16 %v289, %v288
    %v300 = vpack.c.bf16 %v291, %v290
    %v305 = vunpack.c.l.b16 %v293
    %v306 = vunpack.c.h.b16 %v293
    %v307 = vunpack.c.l.b16 %v294
    %v308 = vunpack.c.h.b16 %v294
    %v309 = vunpack.c.l.b16 %v295
    %v310 = vunpack.c.h.b16 %v295
    %v311 = vunpack.c.l.b16 %v296
    %v312 = vunpack.c.h.b16 %v296
    %v313 = vpack.c.b16 %v307, %v305
    %v314 = vpack.c.b16 %v308, %v306
    %v315 = vpack.c.b16 %v311, %v309
    %v316 = vpack.c.b16 %v312, %v310
    %v322 = vsel %vm123, %v297, 0
    %v325 = vsel %vm123, %v298, 0
    %v328 = vsel %vm123, %v299, 0
    %v331 = vsel %vm123, %v300, 0
    %333 = vmatpush.bf16.msra.mxu0 0
    %334 = vmatpush.bf16.msra.mxu0 0
    %335 = vmatpush.bf16.msra.mxu0 0
    %336 = vmatpush.bf16.msra.mxu0 0
    %337 = vmatpush.bf16.msra.mxu0 0
    %338 = vmatpush.bf16.msra.mxu0 0
    %339 = vmatpush.bf16.msra.mxu0 %v315
    %340 = vmatpush.bf16.msra.mxu0 %v313
    %341 = vmatmul.bf16.gmra.mxu0 %v322
    %v342 = vpop.f32.mrf.mxu0
    %v343 = vadd.f32 0.0, %v342
    %v344 = vpop.f32.mrf.mxu0
    %v345 = vadd.f32 0.0, %v344
    %346 = vmatmul.bf16.gmra.mxu0 %v325
    %v347 = vpop.f32.mrf.mxu0
    %v348 = vadd.f32 0.0, %v347
    %v349 = vpop.f32.mrf.mxu0
    %v350 = vadd.f32 0.0, %v349
    %351 = vmatmul.bf16.gmra.mxu0 %v328
    %v352 = vpop.f32.mrf.mxu0
    %v353 = vadd.f32 0.0, %v352
    %v354 = vpop.f32.mrf.mxu0
    %v355 = vadd.f32 0.0, %v354
    %356 = vmatmul.bf16.gmra.mxu0 %v331
    %v357 = vpop.f32.mrf.mxu0
    %v358 = vadd.f32 0.0, %v357
    %v359 = vpop.f32.mrf.mxu0
    %v360 = vadd.f32 0.0, %v359
    %361 = vdwg.mxu0
    %362 = vmatpush.bf16.msra.mxu0 0
    %363 = vmatpush.bf16.msra.mxu0 0
    %364 = vmatpush.bf16.msra.mxu0 0
    %365 = vmatpush.bf16.msra.mxu0 0
    %366 = vmatpush.bf16.msra.mxu0 0
    %367 = vmatpush.bf16.msra.mxu0 0
    %368 = vmatpush.bf16.msra.mxu0 %v316
    %369 = vmatpush.bf16.msra.mxu0 %v314
    %370 = vmatmul.bf16.gmra.mxu0 %v322
    %v371 = vpop.f32.mrf.mxu0
    %v372 = vadd.f32 0.0, %v371
    %v373 = vpop.f32.mrf.mxu0
    %v374 = vadd.f32 0.0, %v373
    %375 = vmatmul.bf16.gmra.mxu0 %v325
    %v376 = vpop.f32.mrf.mxu0
    %v377 = vadd.f32 0.0, %v376
    %v378 = vpop.f32.mrf.mxu0
    %v379 = vadd.f32 0.0, %v378
    %380 = vmatmul.bf16.gmra.mxu0 %v328
    %v381 = vpop.f32.mrf.mxu0
    %v382 = vadd.f32 0.0, %v381
    %v383 = vpop.f32.mrf.mxu0
    %v384 = vadd.f32 0.0, %v383
    %385 = vmatmul.bf16.gmra.mxu0 %v331
    %v386 = vpop.f32.mrf.mxu0
    %v387 = vadd.f32 0.0, %v386
    %v388 = vpop.f32.mrf.mxu0
    %v389 = vadd.f32 0.0, %v388
    %390 = vdwg.mxu0
    %v391 = vadd.f32 %v236, %v343
    %v392 = vadd.f32 %v265, %v372
    %v393 = vadd.f32 %v238, %v345
    %v394 = vadd.f32 %v267, %v374
    %v395 = vadd.f32 %v241, %v348
    %v396 = vadd.f32 %v270, %v377
    %v397 = vadd.f32 %v243, %v350
    %v398 = vadd.f32 %v272, %v379
    %v399 = vadd.f32 %v246, %v353
    %v400 = vadd.f32 %v275, %v382
    %v401 = vadd.f32 %v248, %v355
    %v402 = vadd.f32 %v277, %v384
    %v403 = vadd.f32 %v251, %v358
    %v404 = vadd.f32 %v280, %v387
    %v405 = vadd.f32 %v253, %v360
    %v406 = vadd.f32 %v282, %v389
    %v407 = vld [vmem:[%s0 + $0x3] sm:$0xff]
    %v408 = vld [vmem:[%s0 + $0xb] sm:$0xff]
    %v409 = vld [vmem:[%s0 + $0x13] sm:$0xff]
    %v410 = vld [vmem:[%s0 + $0x1b] sm:$0xff]
    %v411 = vld [vmem:[%s0 + $0x23] sm:$0xff]
    %v412 = vld [vmem:[%s0 + $0x2b] sm:$0xff]
    %v413 = vld [vmem:[%s0 + $0x33] sm:$0xff]
    %v414 = vld [vmem:[%s0 + $0x3b] sm:$0xff]
    %s415 = scalar_lea.vmem %s1, 96
    %v416 = vld [vmem:[%s415] sm:$0xff]
    %v417 = vld [vmem:[%s415 + $0x8] sm:$0xff]
    %v418 = vld [vmem:[%s415 + $0x10] sm:$0xff]
    %v419 = vld [vmem:[%s415 + $0x18] sm:$0xff]
    %v420 = vpack.c.bf16 %v408, %v407
    %v421 = vpack.c.bf16 %v410, %v409
    %v422 = vpack.c.bf16 %v412, %v411
    %v423 = vpack.c.bf16 %v414, %v413
    %v428 = vunpack.c.l.b16 %v416
    %v429 = vunpack.c.h.b16 %v416
    %v430 = vunpack.c.l.b16 %v417
    %v431 = vunpack.c.h.b16 %v417
    %v432 = vunpack.c.l.b16 %v418
    %v433 = vunpack.c.h.b16 %v418
    %v434 = vunpack.c.l.b16 %v419
    %v435 = vunpack.c.h.b16 %v419
    %v436 = vpack.c.b16 %v430, %v428
    %v437 = vpack.c.b16 %v431, %v429
    %v438 = vpack.c.b16 %v434, %v432
    %v439 = vpack.c.b16 %v435, %v433
    %v445 = vsel %vm123, %v420, 0
    %v448 = vsel %vm123, %v421, 0
    %v451 = vsel %vm123, %v422, 0
    %v454 = vsel %vm123, %v423, 0
    %456 = vmatpush.bf16.msra.mxu0 0
    %457 = vmatpush.bf16.msra.mxu0 0
    %458 = vmatpush.bf16.msra.mxu0 0
    %459 = vmatpush.bf16.msra.mxu0 0
    %460 = vmatpush.bf16.msra.mxu0 0
    %461 = vmatpush.bf16.msra.mxu0 0
    %462 = vmatpush.bf16.msra.mxu0 %v438
    %463 = vmatpush.bf16.msra.mxu0 %v436
    %464 = vmatmul.bf16.gmra.mxu0 %v445
    %v465 = vpop.f32.mrf.mxu0
    %v466 = vadd.f32 0.0, %v465
    %v467 = vpop.f32.mrf.mxu0
    %v468 = vadd.f32 0.0, %v467
    %469 = vmatmul.bf16.gmra.mxu0 %v448
    %v470 = vpop.f32.mrf.mxu0
    %v471 = vadd.f32 0.0, %v470
    %v472 = vpop.f32.mrf.mxu0
    %v473 = vadd.f32 0.0, %v472
    %474 = vmatmul.bf16.gmra.mxu0 %v451
    %v475 = vpop.f32.mrf.mxu0
    %v476 = vadd.f32 0.0, %v475
    %v477 = vpop.f32.mrf.mxu0
    %v478 = vadd.f32 0.0, %v477
    %479 = vmatmul.bf16.gmra.mxu0 %v454
    %v480 = vpop.f32.mrf.mxu0
    %v481 = vadd.f32 0.0, %v480
    %v482 = vpop.f32.mrf.mxu0
    %v483 = vadd.f32 0.0, %v482
    %484 = vdwg.mxu0
    %485 = vmatpush.bf16.msra.mxu0 0
    %486 = vmatpush.bf16.msra.mxu0 0
    %487 = vmatpush.bf16.msra.mxu0 0
    %488 = vmatpush.bf16.msra.mxu0 0
    %489 = vmatpush.bf16.msra.mxu0 0
    %490 = vmatpush.bf16.msra.mxu0 0
    %491 = vmatpush.bf16.msra.mxu0 %v439
    %492 = vmatpush.bf16.msra.mxu0 %v437
    %493 = vmatmul.bf16.gmra.mxu0 %v445
    %v494 = vpop.f32.mrf.mxu0
    %v495 = vadd.f32 0.0, %v494
    %v496 = vpop.f32.mrf.mxu0
    %v497 = vadd.f32 0.0, %v496
    %498 = vmatmul.bf16.gmra.mxu0 %v448
    %v499 = vpop.f32.mrf.mxu0
    %v500 = vadd.f32 0.0, %v499
    %v501 = vpop.f32.mrf.mxu0
    %v502 = vadd.f32 0.0, %v501
    %503 = vmatmul.bf16.gmra.mxu0 %v451
    %v504 = vpop.f32.mrf.mxu0
    %v505 = vadd.f32 0.0, %v504
    %v506 = vpop.f32.mrf.mxu0
    %v507 = vadd.f32 0.0, %v506
    %508 = vmatmul.bf16.gmra.mxu0 %v454
    %v509 = vpop.f32.mrf.mxu0
    %v510 = vadd.f32 0.0, %v509
    %v511 = vpop.f32.mrf.mxu0
    %v512 = vadd.f32 0.0, %v511
    %513 = vdwg.mxu0
    %v514 = vadd.f32 %v391, %v466
    %v515 = vadd.f32 %v392, %v495
    %v516 = vadd.f32 %v393, %v468
    %v517 = vadd.f32 %v394, %v497
    %v518 = vadd.f32 %v395, %v471
    %v519 = vadd.f32 %v396, %v500
    %v520 = vadd.f32 %v397, %v473
    %v521 = vadd.f32 %v398, %v502
    %v522 = vadd.f32 %v399, %v476
    %v523 = vadd.f32 %v400, %v505
    %v524 = vadd.f32 %v401, %v478
    %v525 = vadd.f32 %v402, %v507
    %v526 = vadd.f32 %v403, %v481
    %v527 = vadd.f32 %v404, %v510
    %v528 = vadd.f32 %v405, %v483
    %v529 = vadd.f32 %v406, %v512
    %v530 = vld [vmem:[%s0 + $0x4] sm:$0xff]
    %v531 = vld [vmem:[%s0 + $0xc] sm:$0xff]
    %v532 = vld [vmem:[%s0 + $0x14] sm:$0xff]
    %v533 = vld [vmem:[%s0 + $0x1c] sm:$0xff]
    %v534 = vld [vmem:[%s0 + $0x24] sm:$0xff]
    %v535 = vld [vmem:[%s0 + $0x2c] sm:$0xff]
    %v536 = vld [vmem:[%s0 + $0x34] sm:$0xff]
    %v537 = vld [vmem:[%s0 + $0x3c] sm:$0xff]
    %s538 = scalar_lea.vmem %s1, 128
    %v539 = vld [vmem:[%s538] sm:$0xff]
    %v540 = vld [vmem:[%s538 + $0x8] sm:$0xff]
    %v541 = vld [vmem:[%s538 + $0x10] sm:$0xff]
    %v542 = vld [vmem:[%s538 + $0x18] sm:$0xff]
    %v543 = vpack.c.bf16 %v531, %v530
    %v544 = vpack.c.bf16 %v533, %v532
    %v545 = vpack.c.bf16 %v535, %v534
    %v546 = vpack.c.bf16 %v537, %v536
    %v551 = vunpack.c.l.b16 %v539
    %v552 = vunpack.c.h.b16 %v539
    %v553 = vunpack.c.l.b16 %v540
    %v554 = vunpack.c.h.b16 %v540
    %v555 = vunpack.c.l.b16 %v541
    %v556 = vunpack.c.h.b16 %v541
    %v557 = vunpack.c.l.b16 %v542
    %v558 = vunpack.c.h.b16 %v542
    %v559 = vpack.c.b16 %v553, %v551
    %v560 = vpack.c.b16 %v554, %v552
    %v561 = vpack.c.b16 %v557, %v555
    %v562 = vpack.c.b16 %v558, %v556
    %v568 = vsel %vm123, %v543, 0
    %v571 = vsel %vm123, %v544, 0
    %v574 = vsel %vm123, %v545, 0
    %v577 = vsel %vm123, %v546, 0
    %579 = vmatpush.bf16.msra.mxu0 0
    %580 = vmatpush.bf16.msra.mxu0 0
    %581 = vmatpush.bf16.msra.mxu0 0
    %582 = vmatpush.bf16.msra.mxu0 0
    %583 = vmatpush.bf16.msra.mxu0 0
    %584 = vmatpush.bf16.msra.mxu0 0
    %585 = vmatpush.bf16.msra.mxu0 %v561
    %586 = vmatpush.bf16.msra.mxu0 %v559
    %587 = vmatmul.bf16.gmra.mxu0 %v568
    %v588 = vpop.f32.mrf.mxu0
    %v589 = vadd.f32 0.0, %v588
    %v590 = vpop.f32.mrf.mxu0
    %v591 = vadd.f32 0.0, %v590
    %592 = vmatmul.bf16.gmra.mxu0 %v571
    %v593 = vpop.f32.mrf.mxu0
    %v594 = vadd.f32 0.0, %v593
    %v595 = vpop.f32.mrf.mxu0
    %v596 = vadd.f32 0.0, %v595
    %597 = vmatmul.bf16.gmra.mxu0 %v574
    %v598 = vpop.f32.mrf.mxu0
    %v599 = vadd.f32 0.0, %v598
    %v600 = vpop.f32.mrf.mxu0
    %v601 = vadd.f32 0.0, %v600
    %602 = vmatmul.bf16.gmra.mxu0 %v577
    %v603 = vpop.f32.mrf.mxu0
    %v604 = vadd.f32 0.0, %v603
    %v605 = vpop.f32.mrf.mxu0
    %v606 = vadd.f32 0.0, %v605
    %607 = vdwg.mxu0
    %608 = vmatpush.bf16.msra.mxu0 0
    %609 = vmatpush.bf16.msra.mxu0 0
    %610 = vmatpush.bf16.msra.mxu0 0
    %611 = vmatpush.bf16.msra.mxu0 0
    %612 = vmatpush.bf16.msra.mxu0 0
    %613 = vmatpush.bf16.msra.mxu0 0
    %614 = vmatpush.bf16.msra.mxu0 %v562
    %615 = vmatpush.bf16.msra.mxu0 %v560
    %616 = vmatmul.bf16.gmra.mxu0 %v568
    %v617 = vpop.f32.mrf.mxu0
    %v618 = vadd.f32 0.0, %v617
    %v619 = vpop.f32.mrf.mxu0
    %v620 = vadd.f32 0.0, %v619
    %621 = vmatmul.bf16.gmra.mxu0 %v571
    %v622 = vpop.f32.mrf.mxu0
    %v623 = vadd.f32 0.0, %v622
    %v624 = vpop.f32.mrf.mxu0
    %v625 = vadd.f32 0.0, %v624
    %626 = vmatmul.bf16.gmra.mxu0 %v574
    %v627 = vpop.f32.mrf.mxu0
    %v628 = vadd.f32 0.0, %v627
    %v629 = vpop.f32.mrf.mxu0
    %v630 = vadd.f32 0.0, %v629
    %631 = vmatmul.bf16.gmra.mxu0 %v577
    %v632 = vpop.f32.mrf.mxu0
    %v633 = vadd.f32 0.0, %v632
    %v634 = vpop.f32.mrf.mxu0
    %v635 = vadd.f32 0.0, %v634
    %636 = vdwg.mxu0
    %v637 = vadd.f32 %v514, %v589
    %v638 = vadd.f32 %v515, %v618
    %v639 = vadd.f32 %v516, %v591
    %v640 = vadd.f32 %v517, %v620
    %v641 = vadd.f32 %v518, %v594
    %v642 = vadd.f32 %v519, %v623
    %v643 = vadd.f32 %v520, %v596
    %v644 = vadd.f32 %v521, %v625
    %v645 = vadd.f32 %v522, %v599
    %v646 = vadd.f32 %v523, %v628
    %v647 = vadd.f32 %v524, %v601
    %v648 = vadd.f32 %v525, %v630
    %v649 = vadd.f32 %v526, %v604
    %v650 = vadd.f32 %v527, %v633
    %v651 = vadd.f32 %v528, %v606
    %v652 = vadd.f32 %v529, %v635
    %v653 = vld [vmem:[%s2] sm:$0x3]
    %v655 = vperm.slane %v653, 0
    %v656 = vperm.slane %v653, 1
    %v659 = vadd.f32 %v637, %v655
    %v660 = vadd.f32 %v638, %v656
    %v661 = vadd.f32 %v639, %v655
    %v662 = vadd.f32 %v640, %v656
    %v663 = vadd.f32 %v641, %v655
    %v664 = vadd.f32 %v642, %v656
    %v665 = vadd.f32 %v643, %v655
    %v666 = vadd.f32 %v644, %v656
    %v667 = vadd.f32 %v645, %v655
    %v668 = vadd.f32 %v646, %v656
    %v669 = vadd.f32 %v647, %v655
    %v670 = vadd.f32 %v648, %v656
    %v671 = vadd.f32 %v649, %v655
    %v672 = vadd.f32 %v650, %v656
    %v673 = vadd.f32 %v651, %v655
    %v674 = vadd.f32 %v652, %v656
    %v675 = vmax.f32 %v659, 0.0
    %v676 = vmax.f32 %v660, 0.0
    %v677 = vmax.f32 %v661, 0.0
    %v678 = vmax.f32 %v662, 0.0
    %v679 = vmax.f32 %v663, 0.0
    %v680 = vmax.f32 %v664, 0.0
    %v681 = vmax.f32 %v665, 0.0
    %v682 = vmax.f32 %v666, 0.0
    %v683 = vmax.f32 %v667, 0.0
    %v684 = vmax.f32 %v668, 0.0
    %v685 = vmax.f32 %v669, 0.0
    %v686 = vmax.f32 %v670, 0.0
    %v687 = vmax.f32 %v671, 0.0
    %v688 = vmax.f32 %v672, 0.0
    %v689 = vmax.f32 %v673, 0.0
    %v690 = vmax.f32 %v674, 0.0
    %v691 = vld [vmem:[%s3] sm:$0xf]
    %v692 = vld [vmem:[%s3 + $0x4] sm:$0xf]
    %v693 = vld [vmem:[%s3 + $0x8] sm:$0xf]
    %v694 = vld [vmem:[%s3 + $0xc] sm:$0xf]
    %v695 = vld [vmem:[%s3 + $0x10] sm:$0xf]
    %v696 = vld [vmem:[%s3 + $0x14] sm:$0xf]
    %v697 = vld [vmem:[%s3 + $0x18] sm:$0xf]
    %v698 = vld [vmem:[%s3 + $0x1c] sm:$0xf]
    %v699 = vld [vmem:[%s3 + $0x20] sm:$0xf]
    %v700 = vld [vmem:[%s3 + $0x24] sm:$0xf]
    %v701 = vld [vmem:[%s3 + $0x28] sm:$0xf]
    %v702 = vld [vmem:[%s3 + $0x2c] sm:$0xf]
    %v703 = vld [vmem:[%s3 + $0x30] sm:$0xf]
    %v704 = vld [vmem:[%s3 + $0x34] sm:$0xf]
    %v705 = vld [vmem:[%s3 + $0x38] sm:$0xf]
    %v706 = vld [vmem:[%s3 + $0x3c] sm:$0xf]
    %v707 = vld [vmem:[%s3 + $0x40] sm:$0xf]
    %v708 = vld [vmem:[%s3 + $0x44] sm:$0xf]
    %v709 = vld [vmem:[%s3 + $0x48] sm:$0xf]
    %v710 = vld [vmem:[%s3 + $0x4c] sm:$0xf]
    %v711 = vld [vmem:[%s3 + $0x50] sm:$0xf]
    %v712 = vpack.c.bf16 %v677, %v675
    %v713 = vpack.c.bf16 %v678, %v676
    %v714 = vpack.c.bf16 %v681, %v679
    %v715 = vpack.c.bf16 %v682, %v680
    %v716 = vpack.c.bf16 %v685, %v683
    %v717 = vpack.c.bf16 %v686, %v684
    %v718 = vpack.c.bf16 %v689, %v687
    %v719 = vpack.c.bf16 %v690, %v688
    %v741 = vunpack.c.l.b16 %v691
    %v742 = vunpack.c.l.b16 %v692
    %v743 = vunpack.c.l.b16 %v693
    %v744 = vunpack.c.l.b16 %v694
    %v745 = vunpack.c.l.b16 %v695
    %v746 = vunpack.c.l.b16 %v696
    %v747 = vunpack.c.l.b16 %v697
    %v748 = vunpack.c.l.b16 %v698
    %v749 = vunpack.c.l.b16 %v699
    %v750 = vunpack.c.l.b16 %v700
    %v751 = vunpack.c.l.b16 %v701
    %v752 = vunpack.c.l.b16 %v702
    %v753 = vunpack.c.l.b16 %v703
    %v754 = vunpack.c.l.b16 %v704
    %v755 = vunpack.c.l.b16 %v705
    %v756 = vunpack.c.l.b16 %v706
    %v757 = vunpack.c.l.b16 %v707
    %v758 = vunpack.c.l.b16 %v708
    %v759 = vunpack.c.l.b16 %v709
    %v760 = vunpack.c.l.b16 %v710
    %v761 = vunpack.c.l.b16 %v711
    %v762 = vpack.c.b16 %v742, %v741
    %v763 = vpack.c.b16 %v744, %v743
    %v764 = vpack.c.b16 %v746, %v745
    %v765 = vpack.c.b16 %v748, %v747
    %v766 = vpack.c.b16 %v750, %v749
    %v767 = vpack.c.b16 %v752, %v751
    %v768 = vpack.c.b16 %v754, %v753
    %v769 = vpack.c.b16 %v756, %v755
    %v770 = vpack.c.b16 %v758, %v757
    %v771 = vpack.c.b16 %v760, %v759
    %v772 = vpack.c.b16 %v761, %v761
    %vm783 = vcmask 326656
    %v785 = vsel %vm783, %v713, 0
    %v788 = vsel %vm783, %v715, 0
    %v791 = vsel %vm783, %v717, 0
    %v794 = vsel %vm783, %v719, 0
    %vm796 = vcmask 1043456
    %v798 = vsel %vm796, %v772, 0
    %800 = vmatpush.bf16.msra.mxu0 %v769
    %801 = vmatpush.bf16.msra.mxu0 %v768
    %802 = vmatpush.bf16.msra.mxu0 %v767
    %803 = vmatpush.bf16.msra.mxu0 %v766
    %804 = vmatpush.bf16.msra.mxu0 %v765
    %805 = vmatpush.bf16.msra.mxu0 %v764
    %806 = vmatpush.bf16.msra.mxu0 %v763
    %807 = vmatpush.bf16.msra.mxu0 %v762
    %808 = vmatmul.bf16.gmra.mxu0 %v712
    %v809 = vpop.f32.mrf.mxu0
    %v810 = vadd.f32 0.0, %v809
    %v811 = vpop.f32.mrf.mxu0
    %v812 = vadd.f32 0.0, %v811
    %813 = vmatmul.bf16.gmra.mxu0 %v714
    %v814 = vpop.f32.mrf.mxu0
    %v815 = vadd.f32 0.0, %v814
    %v816 = vpop.f32.mrf.mxu0
    %v817 = vadd.f32 0.0, %v816
    %818 = vmatmul.bf16.gmra.mxu0 %v716
    %v819 = vpop.f32.mrf.mxu0
    %v820 = vadd.f32 0.0, %v819
    %v821 = vpop.f32.mrf.mxu0
    %v822 = vadd.f32 0.0, %v821
    %823 = vmatmul.bf16.gmra.mxu0 %v718
    %v824 = vpop.f32.mrf.mxu0
    %v825 = vadd.f32 0.0, %v824
    %v826 = vpop.f32.mrf.mxu0
    %v827 = vadd.f32 0.0, %v826
    %828 = vdwg.mxu0
    %829 = vmatpush.bf16.msra.mxu0 0
    %830 = vmatpush.bf16.msra.mxu0 0
    %831 = vmatpush.bf16.msra.mxu0 0
    %832 = vmatpush.bf16.msra.mxu0 0
    %833 = vmatpush.bf16.msra.mxu0 0
    %834 = vmatpush.bf16.msra.mxu0 %v798
    %835 = vmatpush.bf16.msra.mxu0 %v771
    %836 = vmatpush.bf16.msra.mxu0 %v770
    %837 = vmatmul.bf16.gmra.mxu0 %v785
    %v838 = vpop.f32.mrf.mxu0
    %v839 = vadd.f32 %v810, %v838
    %v840 = vpop.f32.mrf.mxu0
    %v841 = vadd.f32 %v812, %v840
    %842 = vmatmul.bf16.gmra.mxu0 %v788
    %v843 = vpop.f32.mrf.mxu0
    %v844 = vadd.f32 %v815, %v843
    %v845 = vpop.f32.mrf.mxu0
    %v846 = vadd.f32 %v817, %v845
    %847 = vmatmul.bf16.gmra.mxu0 %v791
    %v848 = vpop.f32.mrf.mxu0
    %v849 = vadd.f32 %v820, %v848
    %v850 = vpop.f32.mrf.mxu0
    %v851 = vadd.f32 %v822, %v850
    %852 = vmatmul.bf16.gmra.mxu0 %v794
    %v853 = vpop.f32.mrf.mxu0
    %v854 = vadd.f32 %v825, %v853
    %v855 = vpop.f32.mrf.mxu0
    %v856 = vadd.f32 %v827, %v855
    %857 = vdwg.mxu0
    %v858 = vld [vmem:[%s4] sm:$0xf]
    %v859 = vld [vmem:[%s4 + $0x4] sm:$0xf]
    %v860 = vld [vmem:[%s4 + $0x8] sm:$0xf]
    %v861 = vld [vmem:[%s4 + $0xc] sm:$0xf]
    %v862 = vld [vmem:[%s4 + $0x10] sm:$0xf]
    %v863 = vld [vmem:[%s4 + $0x14] sm:$0xf]
    %v864 = vld [vmem:[%s4 + $0x18] sm:$0xf]
    %v865 = vld [vmem:[%s4 + $0x1c] sm:$0xf]
    %v866 = vld [vmem:[%s4 + $0x20] sm:$0xf]
    %v867 = vld [vmem:[%s4 + $0x24] sm:$0xf]
    %v868 = vld [vmem:[%s4 + $0x28] sm:$0xf]
    %v869 = vld [vmem:[%s4 + $0x2c] sm:$0xf]
    %v870 = vld [vmem:[%s4 + $0x30] sm:$0xf]
    %v871 = vld [vmem:[%s4 + $0x34] sm:$0xf]
    %v872 = vld [vmem:[%s4 + $0x38] sm:$0xf]
    %v873 = vld [vmem:[%s4 + $0x3c] sm:$0xf]
    %v874 = vld [vmem:[%s4 + $0x40] sm:$0xf]
    %v875 = vld [vmem:[%s4 + $0x44] sm:$0xf]
    %v876 = vld [vmem:[%s4 + $0x48] sm:$0xf]
    %v877 = vld [vmem:[%s4 + $0x4c] sm:$0xf]
    %v878 = vld [vmem:[%s4 + $0x50] sm:$0xf]
    %v900 = vunpack.c.l.b16 %v858
    %v901 = vunpack.c.l.b16 %v859
    %v902 = vunpack.c.l.b16 %v860
    %v903 = vunpack.c.l.b16 %v861
    %v904 = vunpack.c.l.b16 %v862
    %v905 = vunpack.c.l.b16 %v863
    %v906 = vunpack.c.l.b16 %v864
    %v907 = vunpack.c.l.b16 %v865
    %v908 = vunpack.c.l.b16 %v866
    %v909 = vunpack.c.l.b16 %v867
    %v910 = vunpack.c.l.b16 %v868
    %v911 = vunpack.c.l.b16 %v869
    %v912 = vunpack.c.l.b16 %v870
    %v913 = vunpack.c.l.b16 %v871
    %v914 = vunpack.c.l.b16 %v872
    %v915 = vunpack.c.l.b16 %v873
    %v916 = vunpack.c.l.b16 %v874
    %v917 = vunpack.c.l.b16 %v875
    %v918 = vunpack.c.l.b16 %v876
    %v919 = vunpack.c.l.b16 %v877
    %v920 = vunpack.c.l.b16 %v878
    %v921 = vpack.c.b16 %v901, %v900
    %v922 = vpack.c.b16 %v903, %v902
    %v923 = vpack.c.b16 %v905, %v904
    %v924 = vpack.c.b16 %v907, %v906
    %v925 = vpack.c.b16 %v909, %v908
    %v926 = vpack.c.b16 %v911, %v910
    %v927 = vpack.c.b16 %v913, %v912
    %v928 = vpack.c.b16 %v915, %v914
    %v929 = vpack.c.b16 %v917, %v916
    %v930 = vpack.c.b16 %v919, %v918
    %v931 = vpack.c.b16 %v920, %v920
    %v943 = vsel %vm796, %v931, 0
    %945 = vmatpush.bf16.msra.mxu0 %v928
    %946 = vmatpush.bf16.msra.mxu0 %v927
    %947 = vmatpush.bf16.msra.mxu0 %v926
    %948 = vmatpush.bf16.msra.mxu0 %v925
    %949 = vmatpush.bf16.msra.mxu0 %v924
    %950 = vmatpush.bf16.msra.mxu0 %v923
    %951 = vmatpush.bf16.msra.mxu0 %v922
    %952 = vmatpush.bf16.msra.mxu0 %v921
    %953 = vmatmul.bf16.gmra.mxu0 %v712
    %v954 = vpop.f32.mrf.mxu0
    %v955 = vadd.f32 0.0, %v954
    %v956 = vpop.f32.mrf.mxu0
    %v957 = vadd.f32 0.0, %v956
    %958 = vmatmul.bf16.gmra.mxu0 %v714
    %v959 = vpop.f32.mrf.mxu0
    %v960 = vadd.f32 0.0, %v959
    %v961 = vpop.f32.mrf.mxu0
    %v962 = vadd.f32 0.0, %v961
    %963 = vmatmul.bf16.gmra.mxu0 %v716
    %v964 = vpop.f32.mrf.mxu0
    %v965 = vadd.f32 0.0, %v964
    %v966 = vpop.f32.mrf.mxu0
    %v967 = vadd.f32 0.0, %v966
    %968 = vmatmul.bf16.gmra.mxu0 %v718
    %v969 = vpop.f32.mrf.mxu0
    %v970 = vadd.f32 0.0, %v969
    %v971 = vpop.f32.mrf.mxu0
    %v972 = vadd.f32 0.0, %v971
    %973 = vdwg.mxu0
    %974 = vmatpush.bf16.msra.mxu0 0
    %975 = vmatpush.bf16.msra.mxu0 0
    %976 = vmatpush.bf16.msra.mxu0 0
    %977 = vmatpush.bf16.msra.mxu0 0
    %978 = vmatpush.bf16.msra.mxu0 0
    %979 = vmatpush.bf16.msra.mxu0 %v943
    %980 = vmatpush.bf16.msra.mxu0 %v930
    %981 = vmatpush.bf16.msra.mxu0 %v929
    %982 = vmatmul.bf16.gmra.mxu0 %v785
    %v983 = vpop.f32.mrf.mxu0
    %v984 = vadd.f32 %v955, %v983
    %v985 = vpop.f32.mrf.mxu0
    %v986 = vadd.f32 %v957, %v985
    %987 = vmatmul.bf16.gmra.mxu0 %v788
    %v988 = vpop.f32.mrf.mxu0
    %v989 = vadd.f32 %v960, %v988
    %v990 = vpop.f32.mrf.mxu0
    %v991 = vadd.f32 %v962, %v990
    %992 = vmatmul.bf16.gmra.mxu0 %v791
    %v993 = vpop.f32.mrf.mxu0
    %v994 = vadd.f32 %v965, %v993
    %v995 = vpop.f32.mrf.mxu0
    %v996 = vadd.f32 %v967, %v995
    %997 = vmatmul.bf16.gmra.mxu0 %v794
    %v998 = vpop.f32.mrf.mxu0
    %v999 = vadd.f32 %v970, %v998
    %v1000 = vpop.f32.mrf.mxu0
    %v1001 = vadd.f32 %v972, %v1000
    %1002 = vdwg.mxu0
    %v1003 = vmax.f32 %v839, %v984
    %v1004 = vmax.f32 %v841, %v986
    %v1005 = vmax.f32 %v844, %v989
    %v1006 = vmax.f32 %v846, %v991
    %v1007 = vmax.f32 %v849, %v994
    %v1008 = vmax.f32 %v851, %v996
    %v1009 = vmax.f32 %v854, %v999
    %v1010 = vmax.f32 %v856, %v1001
    %v1011 = vld [vmem:[%s5] sm:$0xf]
    %v1012 = vld [vmem:[%s5 + $0x4] sm:$0xf]
    %v1013 = vld [vmem:[%s5 + $0x8] sm:$0xf]
    %v1014 = vld [vmem:[%s5 + $0xc] sm:$0xf]
    %v1015 = vpack.c.bf16 %v1004, %v1003
    %v1016 = vpack.c.bf16 %v1006, %v1005
    %v1017 = vpack.c.bf16 %v1008, %v1007
    %v1018 = vpack.c.bf16 %v1010, %v1009
    %v1023 = vunpack.c.l.b16 %v1011
    %v1024 = vunpack.c.l.b16 %v1012
    %v1025 = vunpack.c.l.b16 %v1013
    %v1026 = vunpack.c.l.b16 %v1014
    %v1027 = vpack.c.b16 %v1024, %v1023
    %v1028 = vpack.c.b16 %v1026, %v1025
    %vm1029 = vcmask 523264
    %v1031 = vsel %vm1029, %v1027, 0
    %v1034 = vsel %vm1029, %v1028, 0
    %1036 = vmatpush.bf16.msra.mxu0 0
    %1037 = vmatpush.bf16.msra.mxu0 0
    %1038 = vmatpush.bf16.msra.mxu0 0
    %1039 = vmatpush.bf16.msra.mxu0 0
    %1040 = vmatpush.bf16.msra.mxu0 %v1018
    %1041 = vmatpush.bf16.msra.mxu0 %v1017
    %1042 = vmatpush.bf16.msra.mxu0 %v1016
    %1043 = vmatpush.bf16.msra.mxu0 %v1015
    %1044 = vmatmul.bf16.gmra.mxu0 %v1031
    %v1045 = vpop.f32.mrf.mxu0
    %v1046 = vadd.f32 0.0, %v1045
    %v1047 = vpop.f32.mrf.mxu0
    %v1048 = vadd.f32 0.0, %v1047
    %1049 = vmatmul.bf16.gmra.mxu0 %v1034
    %v1050 = vpop.f32.mrf.mxu0
    %v1051 = vadd.f32 0.0, %v1050
    %v1052 = vpop.f32.mrf.mxu0
    %v1053 = vadd.f32 0.0, %v1052
    %1054 = vdwg.mxu0
    %v1055 = vld [vmem:[%s6] sm:$0xf]
    %v1056 = vld [vmem:[%s6 + $0x4] sm:$0xf]
    %v1057 = vld [vmem:[%s6 + $0x8] sm:$0xf]
    %v1058 = vld [vmem:[%s6 + $0xc] sm:$0xf]
    %v1063 = vunpack.c.l.b16 %v1055
    %v1064 = vunpack.c.l.b16 %v1056
    %v1065 = vunpack.c.l.b16 %v1057
    %v1066 = vunpack.c.l.b16 %v1058
    %v1067 = vpack.c.b16 %v1064, %v1063
    %v1068 = vpack.c.b16 %v1066, %v1065
    %v1070 = vsel %vm1029, %v1067, 0
    %v1073 = vsel %vm1029, %v1068, 0
    %1075 = vmatpush.bf16.msra.mxu0 0
    %1076 = vmatpush.bf16.msra.mxu0 0
    %1077 = vmatpush.bf16.msra.mxu0 0
    %1078 = vmatpush.bf16.msra.mxu0 0
    %1079 = vmatpush.bf16.msra.mxu0 %v1018
    %1080 = vmatpush.bf16.msra.mxu0 %v1017
    %1081 = vmatpush.bf16.msra.mxu0 %v1016
    %1082 = vmatpush.bf16.msra.mxu0 %v1015
    %1083 = vmatmul.bf16.gmra.mxu0 %v1070
    %v1084 = vpop.f32.mrf.mxu0
    %v1085 = vadd.f32 0.0, %v1084
    %v1086 = vpop.f32.mrf.mxu0
    %v1087 = vadd.f32 0.0, %v1086
    %1088 = vmatmul.bf16.gmra.mxu0 %v1073
    %v1089 = vpop.f32.mrf.mxu0
    %v1090 = vadd.f32 0.0, %v1089
    %v1091 = vpop.f32.mrf.mxu0
    %v1092 = vadd.f32 0.0, %v1091
    %1093 = vdwg.mxu0
    %v1094 = vmax.f32 %v1046, %v1085
    %v1095 = vmax.f32 %v1048, %v1087
    %v1096 = vmax.f32 %v1051, %v1090
    %v1097 = vmax.f32 %v1053, %v1092
    %vm1098 = vcmask 687104
    %1099 = vst.msk [vmem:[#allocation2] sm:$0xff] %vm1098, %v1094
    %1100 = vst.msk [vmem:[#allocation2 + $0x8] sm:$0xff] %vm1098, %v1095
    %1101 = vst.msk [vmem:[#allocation2 + $0x10] sm:$0xff] %vm1098, %v1096
    %1102 = vst.msk [vmem:[#allocation2 + $0x18] sm:$0xff] %vm1098, %v1097
    %1103 = vst.msk [vmem:[#allocation2 + $0x20] sm:$0xff] %vm1098, 0.0
    %v1104 = vld [vmem:[%s7] sm:$0xff]
    %v1105 = vld [vmem:[%s7 + $0x8] sm:$0xff]
    %v1106 = vld [vmem:[%s7 + $0x10] sm:$0xff]
    %v1107 = vld [vmem:[%s7 + $0x18] sm:$0xff]
    %v1108 = vld [vmem:[%s7 + $0x20] sm:$0xff]
    %v1109 = vld [vmem:[%s7 + $0x28] sm:$0xff]
    %v1110 = vld [vmem:[%s7 + $0x30] sm:$0xff]
    %v1111 = vld [vmem:[%s7 + $0x38] sm:$0xff]
    %v1112 = vld [vmem:[%s7 + $0x40] sm:$0xff]
    %v1113 = vld [vmem:[%s7 + $0x48] sm:$0xff]
    %v1114 = vld [vmem:[%s7 + $0x50] sm:$0x33]
    %v1115 = vpack.c.bf16 %v1095, %v1094
    %v1116 = vpack.c.bf16 %v1097, %v1096
    %v1117 = vld [vmem:[#allocation2 + $0x1] sm:$0xff]
    %v1118 = vld [vmem:[#allocation2 + $0x9] sm:$0xff]
    %v1119 = vld [vmem:[#allocation2 + $0x11] sm:$0xff]
    %v1120 = vld [vmem:[#allocation2 + $0x19] sm:$0xff]
    %s1121 = scalar_lea.vmem %s7, 88
    %v1122 = vld [vmem:[%s1121] sm:$0xff]
    %v1123 = vld [vmem:[%s1121 + $0x8] sm:$0xff]
    %v1124 = vld [vmem:[%s1121 + $0x10] sm:$0xff]
    %v1125 = vld [vmem:[%s1121 + $0x18] sm:$0xff]
    %v1126 = vld [vmem:[%s1121 + $0x20] sm:$0xff]
    %v1127 = vld [vmem:[%s1121 + $0x28] sm:$0xff]
    %v1128 = vld [vmem:[%s1121 + $0x30] sm:$0xff]
    %v1129 = vld [vmem:[%s1121 + $0x38] sm:$0xff]
    %v1130 = vld [vmem:[%s1121 + $0x40] sm:$0xff]
    %v1131 = vld [vmem:[%s1121 + $0x48] sm:$0xff]
    %v1132 = vld [vmem:[%s1121 + $0x50] sm:$0x33]
    %v1133 = vpack.c.bf16 %v1118, %v1117
    %v1134 = vpack.c.bf16 %v1120, %v1119
    %v1146 = vunpack.c.l.b16 %v1122
    %v1147 = vunpack.c.h.b16 %v1122
    %v1148 = vunpack.c.l.b16 %v1123
    %v1149 = vunpack.c.h.b16 %v1123
    %v1150 = vunpack.c.l.b16 %v1124
    %v1151 = vunpack.c.h.b16 %v1124
    %v1152 = vunpack.c.l.b16 %v1125
    %v1153 = vunpack.c.h.b16 %v1125
    %v1154 = vunpack.c.l.b16 %v1126
    %v1155 = vunpack.c.h.b16 %v1126
    %v1156 = vunpack.c.l.b16 %v1127
    %v1157 = vunpack.c.h.b16 %v1127
    %v1158 = vunpack.c.l.b16 %v1128
    %v1159 = vunpack.c.h.b16 %v1128
    %v1160 = vunpack.c.l.b16 %v1129
    %v1161 = vunpack.c.h.b16 %v1129
    %v1162 = vunpack.c.l.b16 %v1130
    %v1163 = vunpack.c.h.b16 %v1130
    %v1164 = vunpack.c.l.b16 %v1131
    %v1165 = vunpack.c.h.b16 %v1131
    %v1166 = vunpack.c.l.b16 %v1132
    %v1167 = vunpack.c.h.b16 %v1132
    %v1168 = vpack.c.b16 %v1148, %v1146
    %v1169 = vpack.c.b16 %v1149, %v1147
    %v1170 = vpack.c.b16 %v1152, %v1150
    %v1171 = vpack.c.b16 %v1153, %v1151
    %v1172 = vpack.c.b16 %v1156, %v1154
    %v1173 = vpack.c.b16 %v1157, %v1155
    %v1174 = vpack.c.b16 %v1160, %v1158
    %v1175 = vpack.c.b16 %v1161, %v1159
    %v1176 = vpack.c.b16 %v1164, %v1162
    %v1177 = vpack.c.b16 %v1165, %v1163
    %v1178 = vpack.c.b16 %v1166, %v1166
    %v1179 = vpack.c.b16 %v1167, %v1167
    %v1191 = vsel %vm1098, %v1133, 0
    %v1194 = vsel %vm1098, %v1134, 0
    %vm1196 = vcmask 1041408
    %v1198 = vsel %vm1196, %v1178, 0
    %v1201 = vsel %vm1196, %v1179, 0
    %1203 = vmatpush.bf16.msra.mxu0 0
    %1204 = vmatpush.bf16.msra.mxu0 0
    %1205 = vmatpush.bf16.msra.mxu0 %v1198
    %1206 = vmatpush.bf16.msra.mxu0 %v1176
    %1207 = vmatpush.bf16.msra.mxu0 %v1174
    %1208 = vmatpush.bf16.msra.mxu0 %v1172
    %1209 = vmatpush.bf16.msra.mxu0 %v1170
    %1210 = vmatpush.bf16.msra.mxu0 %v1168
    %1211 = vmatmul.bf16.gmra.mxu0 %v1191
    %v1212 = vpop.f32.mrf.mxu0
    %v1213 = vadd.f32 0.0, %v1212
    %v1214 = vpop.f32.mrf.mxu0
    %v1215 = vadd.f32 0.0, %v1214
    %1216 = vmatmul.bf16.gmra.mxu0 %v1194
    %v1217 = vpop.f32.mrf.mxu0
    %v1218 = vadd.f32 0.0, %v1217
    %v1219 = vpop.f32.mrf.mxu0
    %v1220 = vadd.f32 0.0, %v1219
    %1221 = vdwg.mxu0
    %1222 = vmatpush.bf16.msra.mxu0 0
    %1223 = vmatpush.bf16.msra.mxu0 0
    %1224 = vmatpush.bf16.msra.mxu0 %v1201
    %1225 = vmatpush.bf16.msra.mxu0 %v1177
    %1226 = vmatpush.bf16.msra.mxu0 %v1175
    %1227 = vmatpush.bf16.msra.mxu0 %v1173
    %1228 = vmatpush.bf16.msra.mxu0 %v1171
    %1229 = vmatpush.bf16.msra.mxu0 %v1169
    %1230 = vmatmul.bf16.gmra.mxu0 %v1191
    %v1231 = vpop.f32.mrf.mxu0
    %v1232 = vadd.f32 0.0, %v1231
    %v1233 = vpop.f32.mrf.mxu0
    %v1234 = vadd.f32 0.0, %v1233
    %1235 = vmatmul.bf16.gmra.mxu0 %v1194
    %v1236 = vpop.f32.mrf.mxu0
    %v1237 = vadd.f32 0.0, %v1236
    %v1238 = vpop.f32.mrf.mxu0
    %v1239 = vadd.f32 0.0, %v1238
    %1240 = vdwg.mxu0
    %v1252 = vunpack.c.l.b16 %v1104
    %v1253 = vunpack.c.h.b16 %v1104
    %v1254 = vunpack.c.l.b16 %v1105
    %v1255 = vunpack.c.h.b16 %v1105
    %v1256 = vunpack.c.l.b16 %v1106
    %v1257 = vunpack.c.h.b16 %v1106
    %v1258 = vunpack.c.l.b16 %v1107
    %v1259 = vunpack.c.h.b16 %v1107
    %v1260 = vunpack.c.l.b16 %v1108
    %v1261 = vunpack.c.h.b16 %v1108
    %v1262 = vunpack.c.l.b16 %v1109
    %v1263 = vunpack.c.h.b16 %v1109
    %v1264 = vunpack.c.l.b16 %v1110
    %v1265 = vunpack.c.h.b16 %v1110
    %v1266 = vunpack.c.l.b16 %v1111
    %v1267 = vunpack.c.h.b16 %v1111
    %v1268 = vunpack.c.l.b16 %v1112
    %v1269 = vunpack.c.h.b16 %v1112
    %v1270 = vunpack.c.l.b16 %v1113
    %v1271 = vunpack.c.h.b16 %v1113
    %v1272 = vunpack.c.l.b16 %v1114
    %v1273 = vunpack.c.h.b16 %v1114
    %v1274 = vpack.c.b16 %v1254, %v1252
    %v1275 = vpack.c.b16 %v1255, %v1253
    %v1276 = vpack.c.b16 %v1258, %v1256
    %v1277 = vpack.c.b16 %v1259, %v1257
    %v1278 = vpack.c.b16 %v1262, %v1260
    %v1279 = vpack.c.b16 %v1263, %v1261
    %v1280 = vpack.c.b16 %v1266, %v1264
    %v1281 = vpack.c.b16 %v1267, %v1265
    %v1282 = vpack.c.b16 %v1270, %v1268
    %v1283 = vpack.c.b16 %v1271, %v1269
    %v1284 = vpack.c.b16 %v1272, %v1272
    %v1285 = vpack.c.b16 %v1273, %v1273
    %v1297 = vsel %vm1098, %v1115, 0
    %v1300 = vsel %vm1098, %v1116, 0
    %v1303 = vsel %vm1196, %v1284, 0
    %v1306 = vsel %vm1196, %v1285, 0
    %1308 = vmatpush.bf16.msra.mxu0 0
    %1309 = vmatpush.bf16.msra.mxu0 0
    %1310 = vmatpush.bf16.msra.mxu0 %v1303
    %1311 = vmatpush.bf16.msra.mxu0 %v1282
    %1312 = vmatpush.bf16.msra.mxu0 %v1280
    %1313 = vmatpush.bf16.msra.mxu0 %v1278
    %1314 = vmatpush.bf16.msra.mxu0 %v1276
    %1315 = vmatpush.bf16.msra.mxu0 %v1274
    %1316 = vmatmul.bf16.gmra.mxu0 %v1297
    %v1317 = vpop.f32.mrf.mxu0
    %v1318 = vadd.f32 %v1213, %v1317
    %v1319 = vpop.f32.mrf.mxu0
    %v1320 = vadd.f32 %v1215, %v1319
    %1321 = vmatmul.bf16.gmra.mxu0 %v1300
    %v1322 = vpop.f32.mrf.mxu0
    %v1323 = vadd.f32 %v1218, %v1322
    %v1324 = vpop.f32.mrf.mxu0
    %v1325 = vadd.f32 %v1220, %v1324
    %1326 = vdwg.mxu0
    %1327 = vmatpush.bf16.msra.mxu0 0
    %1328 = vmatpush.bf16.msra.mxu0 0
    %1329 = vmatpush.bf16.msra.mxu0 %v1306
    %1330 = vmatpush.bf16.msra.mxu0 %v1283
    %1331 = vmatpush.bf16.msra.mxu0 %v1281
    %1332 = vmatpush.bf16.msra.mxu0 %v1279
    %1333 = vmatpush.bf16.msra.mxu0 %v1277
    %1334 = vmatpush.bf16.msra.mxu0 %v1275
    %1335 = vmatmul.bf16.gmra.mxu0 %v1297
    %v1336 = vpop.f32.mrf.mxu0
    %v1337 = vadd.f32 %v1232, %v1336
    %v1338 = vpop.f32.mrf.mxu0
    %v1339 = vadd.f32 %v1234, %v1338
    %1340 = vmatmul.bf16.gmra.mxu0 %v1300
    %v1341 = vpop.f32.mrf.mxu0
    %v1342 = vadd.f32 %v1237, %v1341
    %v1343 = vpop.f32.mrf.mxu0
    %v1344 = vadd.f32 %v1239, %v1343
    %1345 = vdwg.mxu0
    %v1346 = vld [vmem:[#allocation2 + $0x2] sm:$0xff]
    %v1347 = vld [vmem:[#allocation2 + $0xa] sm:$0xff]
    %v1348 = vld [vmem:[#allocation2 + $0x12] sm:$0xff]
    %v1349 = vld [vmem:[#allocation2 + $0x1a] sm:$0xff]
    %s1350 = scalar_lea.vmem %s7, 176
    %v1351 = vld [vmem:[%s1350] sm:$0xff]
    %v1352 = vld [vmem:[%s1350 + $0x8] sm:$0xff]
    %v1353 = vld [vmem:[%s1350 + $0x10] sm:$0xff]
    %v1354 = vld [vmem:[%s1350 + $0x18] sm:$0xff]
    %v1355 = vld [vmem:[%s1350 + $0x20] sm:$0xff]
    %v1356 = vld [vmem:[%s1350 + $0x28] sm:$0xff]
    %v1357 = vld [vmem:[%s1350 + $0x30] sm:$0xff]
    %v1358 = vld [vmem:[%s1350 + $0x38] sm:$0xff]
    %v1359 = vld [vmem:[%s1350 + $0x40] sm:$0xff]
    %v1360 = vld [vmem:[%s1350 + $0x48] sm:$0xff]
    %v1361 = vld [vmem:[%s1350 + $0x50] sm:$0x33]
    %v1362 = vpack.c.bf16 %v1347, %v1346
    %v1363 = vpack.c.bf16 %v1349, %v1348
    %v1375 = vunpack.c.l.b16 %v1351
    %v1376 = vunpack.c.h.b16 %v1351
    %v1377 = vunpack.c.l.b16 %v1352
    %v1378 = vunpack.c.h.b16 %v1352
    %v1379 = vunpack.c.l.b16 %v1353
    %v1380 = vunpack.c.h.b16 %v1353
    %v1381 = vunpack.c.l.b16 %v1354
    %v1382 = vunpack.c.h.b16 %v1354
    %v1383 = vunpack.c.l.b16 %v1355
    %v1384 = vunpack.c.h.b16 %v1355
    %v1385 = vunpack.c.l.b16 %v1356
    %v1386 = vunpack.c.h.b16 %v1356
    %v1387 = vunpack.c.l.b16 %v1357
    %v1388 = vunpack.c.h.b16 %v1357
    %v1389 = vunpack.c.l.b16 %v1358
    %v1390 = vunpack.c.h.b16 %v1358
    %v1391 = vunpack.c.l.b16 %v1359
    %v1392 = vunpack.c.h.b16 %v1359
    %v1393 = vunpack.c.l.b16 %v1360
    %v1394 = vunpack.c.h.b16 %v1360
    %v1395 = vunpack.c.l.b16 %v1361
    %v1396 = vunpack.c.h.b16 %v1361
    %v1397 = vpack.c.b16 %v1377, %v1375
    %v1398 = vpack.c.b16 %v1378, %v1376
    %v1399 = vpack.c.b16 %v1381, %v1379
    %v1400 = vpack.c.b16 %v1382, %v1380
    %v1401 = vpack.c.b16 %v1385, %v1383
    %v1402 = vpack.c.b16 %v1386, %v1384
    %v1403 = vpack.c.b16 %v1389, %v1387
    %v1404 = vpack.c.b16 %v1390, %v1388
    %v1405 = vpack.c.b16 %v1393, %v1391
    %v1406 = vpack.c.b16 %v1394, %v1392
    %v1407 = vpack.c.b16 %v1395, %v1395
    %v1408 = vpack.c.b16 %v1396, %v1396
    %v1420 = vsel %vm1098, %v1362, 0
    %v1423 = vsel %vm1098, %v1363, 0
    %v1426 = vsel %vm1196, %v1407, 0
    %v1429 = vsel %vm1196, %v1408, 0
    %1431 = vmatpush.bf16.msra.mxu0 0
    %1432 = vmatpush.bf16.msra.mxu0 0
    %1433 = vmatpush.bf16.msra.mxu0 %v1426
    %1434 = vmatpush.bf16.msra.mxu0 %v1405
    %1435 = vmatpush.bf16.msra.mxu0 %v1403
    %1436 = vmatpush.bf16.msra.mxu0 %v1401
    %1437 = vmatpush.bf16.msra.mxu0 %v1399
    %1438 = vmatpush.bf16.msra.mxu0 %v1397
    %1439 = vmatmul.bf16.gmra.mxu0 %v1420
    %v1440 = vpop.f32.mrf.mxu0
    %v1441 = vadd.f32 0.0, %v1440
    %v1442 = vpop.f32.mrf.mxu0
    %v1443 = vadd.f32 0.0, %v1442
    %1444 = vmatmul.bf16.gmra.mxu0 %v1423
    %v1445 = vpop.f32.mrf.mxu0
    %v1446 = vadd.f32 0.0, %v1445
    %v1447 = vpop.f32.mrf.mxu0
    %v1448 = vadd.f32 0.0, %v1447
    %1449 = vdwg.mxu0
    %1450 = vmatpush.bf16.msra.mxu0 0
    %1451 = vmatpush.bf16.msra.mxu0 0
    %1452 = vmatpush.bf16.msra.mxu0 %v1429
    %1453 = vmatpush.bf16.msra.mxu0 %v1406
    %1454 = vmatpush.bf16.msra.mxu0 %v1404
    %1455 = vmatpush.bf16.msra.mxu0 %v1402
    %1456 = vmatpush.bf16.msra.mxu0 %v1400
    %1457 = vmatpush.bf16.msra.mxu0 %v1398
    %1458 = vmatmul.bf16.gmra.mxu0 %v1420
    %v1459 = vpop.f32.mrf.mxu0
    %v1460 = vadd.f32 0.0, %v1459
    %v1461 = vpop.f32.mrf.mxu0
    %v1462 = vadd.f32 0.0, %v1461
    %1463 = vmatmul.bf16.gmra.mxu0 %v1423
    %v1464 = vpop.f32.mrf.mxu0
    %v1465 = vadd.f32 0.0, %v1464
    %v1466 = vpop.f32.mrf.mxu0
    %v1467 = vadd.f32 0.0, %v1466
    %1468 = vdwg.mxu0
    %v1469 = vadd.f32 %v1318, %v1441
    %v1470 = vadd.f32 %v1337, %v1460
    %v1471 = vadd.f32 %v1320, %v1443
    %v1472 = vadd.f32 %v1339, %v1462
    %v1473 = vadd.f32 %v1323, %v1446
    %v1474 = vadd.f32 %v1342, %v1465
    %v1475 = vadd.f32 %v1325, %v1448
    %v1476 = vadd.f32 %v1344, %v1467
    %v1477 = vld [vmem:[#allocation2 + $0x3] sm:$0xff]
    %v1478 = vld [vmem:[#allocation2 + $0xb] sm:$0xff]
    %v1479 = vld [vmem:[#allocation2 + $0x13] sm:$0xff]
    %v1480 = vld [vmem:[#allocation2 + $0x1b] sm:$0xff]
    %s1481 = scalar_lea.vmem %s7, 264
    %v1482 = vld [vmem:[%s1481] sm:$0xff]
    %v1483 = vld [vmem:[%s1481 + $0x8] sm:$0xff]
    %v1484 = vld [vmem:[%s1481 + $0x10] sm:$0xff]
    %v1485 = vld [vmem:[%s1481 + $0x18] sm:$0xff]
    %v1486 = vld [vmem:[%s1481 + $0x20] sm:$0xff]
    %v1487 = vld [vmem:[%s1481 + $0x28] sm:$0xff]
    %v1488 = vld [vmem:[%s1481 + $0x30] sm:$0xff]
    %v1489 = vld [vmem:[%s1481 + $0x38] sm:$0xff]
    %v1490 = vld [vmem:[%s1481 + $0x40] sm:$0xff]
    %v1491 = vld [vmem:[%s1481 + $0x48] sm:$0xff]
    %v1492 = vld [vmem:[%s1481 + $0x50] sm:$0x33]
    %v1493 = vpack.c.bf16 %v1478, %v1477
    %v1494 = vpack.c.bf16 %v1480, %v1479
    %v1506 = vunpack.c.l.b16 %v1482
    %v1507 = vunpack.c.h.b16 %v1482
    %v1508 = vunpack.c.l.b16 %v1483
    %v1509 = vunpack.c.h.b16 %v1483
    %v1510 = vunpack.c.l.b16 %v1484
    %v1511 = vunpack.c.h.b16 %v1484
    %v1512 = vunpack.c.l.b16 %v1485
    %v1513 = vunpack.c.h.b16 %v1485
    %v1514 = vunpack.c.l.b16 %v1486
    %v1515 = vunpack.c.h.b16 %v1486
    %v1516 = vunpack.c.l.b16 %v1487
    %v1517 = vunpack.c.h.b16 %v1487
    %v1518 = vunpack.c.l.b16 %v1488
    %v1519 = vunpack.c.h.b16 %v1488
    %v1520 = vunpack.c.l.b16 %v1489
    %v1521 = vunpack.c.h.b16 %v1489
    %v1522 = vunpack.c.l.b16 %v1490
    %v1523 = vunpack.c.h.b16 %v1490
    %v1524 = vunpack.c.l.b16 %v1491
    %v1525 = vunpack.c.h.b16 %v1491
    %v1526 = vunpack.c.l.b16 %v1492
    %v1527 = vunpack.c.h.b16 %v1492
    %v1528 = vpack.c.b16 %v1508, %v1506
    %v1529 = vpack.c.b16 %v1509, %v1507
    %v1530 = vpack.c.b16 %v1512, %v1510
    %v1531 = vpack.c.b16 %v1513, %v1511
    %v1532 = vpack.c.b16 %v1516, %v1514
    %v1533 = vpack.c.b16 %v1517, %v1515
    %v1534 = vpack.c.b16 %v1520, %v1518
    %v1535 = vpack.c.b16 %v1521, %v1519
    %v1536 = vpack.c.b16 %v1524, %v1522
    %v1537 = vpack.c.b16 %v1525, %v1523
    %v1538 = vpack.c.b16 %v1526, %v1526
    %v1539 = vpack.c.b16 %v1527, %v1527
    %v1551 = vsel %vm1098, %v1493, 0
    %v1554 = vsel %vm1098, %v1494, 0
    %v1557 = vsel %vm1196, %v1538, 0
    %v1560 = vsel %vm1196, %v1539, 0
    %1562 = vmatpush.bf16.msra.mxu0 0
    %1563 = vmatpush.bf16.msra.mxu0 0
    %1564 = vmatpush.bf16.msra.mxu0 %v1557
    %1565 = vmatpush.bf16.msra.mxu0 %v1536
    %1566 = vmatpush.bf16.msra.mxu0 %v1534
    %1567 = vmatpush.bf16.msra.mxu0 %v1532
    %1568 = vmatpush.bf16.msra.mxu0 %v1530
    %1569 = vmatpush.bf16.msra.mxu0 %v1528
    %1570 = vmatmul.bf16.gmra.mxu0 %v1551
    %v1571 = vpop.f32.mrf.mxu0
    %v1572 = vadd.f32 0.0, %v1571
    %v1573 = vpop.f32.mrf.mxu0
    %v1574 = vadd.f32 0.0, %v1573
    %1575 = vmatmul.bf16.gmra.mxu0 %v1554
    %v1576 = vpop.f32.mrf.mxu0
    %v1577 = vadd.f32 0.0, %v1576
    %v1578 = vpop.f32.mrf.mxu0
    %v1579 = vadd.f32 0.0, %v1578
    %1580 = vdwg.mxu0
    %1581 = vmatpush.bf16.msra.mxu0 0
    %1582 = vmatpush.bf16.msra.mxu0 0
    %1583 = vmatpush.bf16.msra.mxu0 %v1560
    %1584 = vmatpush.bf16.msra.mxu0 %v1537
    %1585 = vmatpush.bf16.msra.mxu0 %v1535
    %1586 = vmatpush.bf16.msra.mxu0 %v1533
    %1587 = vmatpush.bf16.msra.mxu0 %v1531
    %1588 = vmatpush.bf16.msra.mxu0 %v1529
    %1589 = vmatmul.bf16.gmra.mxu0 %v1551
    %v1590 = vpop.f32.mrf.mxu0
    %v1591 = vadd.f32 0.0, %v1590
    %v1592 = vpop.f32.mrf.mxu0
    %v1593 = vadd.f32 0.0, %v1592
    %1594 = vmatmul.bf16.gmra.mxu0 %v1554
    %v1595 = vpop.f32.mrf.mxu0
    %v1596 = vadd.f32 0.0, %v1595
    %v1597 = vpop.f32.mrf.mxu0
    %v1598 = vadd.f32 0.0, %v1597
    %1599 = vdwg.mxu0
    %v1600 = vadd.f32 %v1469, %v1572
    %v1601 = vadd.f32 %v1470, %v1591
    %v1602 = vadd.f32 %v1471, %v1574
    %v1603 = vadd.f32 %v1472, %v1593
    %v1604 = vadd.f32 %v1473, %v1577
    %v1605 = vadd.f32 %v1474, %v1596
    %v1606 = vadd.f32 %v1475, %v1579
    %v1607 = vadd.f32 %v1476, %v1598
    %v1608 = vld [vmem:[#allocation2 + $0x4] sm:$0xff]
    %v1609 = vld [vmem:[#allocation2 + $0xc] sm:$0xff]
    %v1610 = vld [vmem:[#allocation2 + $0x14] sm:$0xff]
    %v1611 = vld [vmem:[#allocation2 + $0x1c] sm:$0xff]
    %s1612 = scalar_lea.vmem %s7, 352
    %v1613 = vld [vmem:[%s1612] sm:$0xff]
    %v1614 = vld [vmem:[%s1612 + $0x8] sm:$0xff]
    %v1615 = vld [vmem:[%s1612 + $0x10] sm:$0xff]
    %v1616 = vld [vmem:[%s1612 + $0x18] sm:$0xff]
    %v1617 = vld [vmem:[%s1612 + $0x20] sm:$0xff]
    %v1618 = vld [vmem:[%s1612 + $0x28] sm:$0xff]
    %v1619 = vld [vmem:[%s1612 + $0x30] sm:$0xff]
    %v1620 = vld [vmem:[%s1612 + $0x38] sm:$0xff]
    %v1621 = vld [vmem:[%s1612 + $0x40] sm:$0xff]
    %v1622 = vld [vmem:[%s1612 + $0x48] sm:$0xff]
    %v1623 = vld [vmem:[%s1612 + $0x50] sm:$0x33]
    %v1624 = vpack.c.bf16 %v1609, %v1608
    %v1625 = vpack.c.bf16 %v1611, %v1610
    %v1637 = vunpack.c.l.b16 %v1613
    %v1638 = vunpack.c.h.b16 %v1613
    %v1639 = vunpack.c.l.b16 %v1614
    %v1640 = vunpack.c.h.b16 %v1614
    %v1641 = vunpack.c.l.b16 %v1615
    %v1642 = vunpack.c.h.b16 %v1615
    %v1643 = vunpack.c.l.b16 %v1616
    %v1644 = vunpack.c.h.b16 %v1616
    %v1645 = vunpack.c.l.b16 %v1617
    %v1646 = vunpack.c.h.b16 %v1617
    %v1647 = vunpack.c.l.b16 %v1618
    %v1648 = vunpack.c.h.b16 %v1618
    %v1649 = vunpack.c.l.b16 %v1619
    %v1650 = vunpack.c.h.b16 %v1619
    %v1651 = vunpack.c.l.b16 %v1620
    %v1652 = vunpack.c.h.b16 %v1620
    %v1653 = vunpack.c.l.b16 %v1621
    %v1654 = vunpack.c.h.b16 %v1621
    %v1655 = vunpack.c.l.b16 %v1622
    %v1656 = vunpack.c.h.b16 %v1622
    %v1657 = vunpack.c.l.b16 %v1623
    %v1658 = vunpack.c.h.b16 %v1623
    %v1659 = vpack.c.b16 %v1639, %v1637
    %v1660 = vpack.c.b16 %v1640, %v1638
    %v1661 = vpack.c.b16 %v1643, %v1641
    %v1662 = vpack.c.b16 %v1644, %v1642
    %v1663 = vpack.c.b16 %v1647, %v1645
    %v1664 = vpack.c.b16 %v1648, %v1646
    %v1665 = vpack.c.b16 %v1651, %v1649
    %v1666 = vpack.c.b16 %v1652, %v1650
    %v1667 = vpack.c.b16 %v1655, %v1653
    %v1668 = vpack.c.b16 %v1656, %v1654
    %v1669 = vpack.c.b16 %v1657, %v1657
    %v1670 = vpack.c.b16 %v1658, %v1658
    %v1682 = vsel %vm1098, %v1624, 0
    %v1685 = vsel %vm1098, %v1625, 0
    %v1688 = vsel %vm1196, %v1669, 0
    %v1691 = vsel %vm1196, %v1670, 0
    %1693 = vmatpush.bf16.msra.mxu0 0
    %1694 = vmatpush.bf16.msra.mxu0 0
    %1695 = vmatpush.bf16.msra.mxu0 %v1688
    %1696 = vmatpush.bf16.msra.mxu0 %v1667
    %1697 = vmatpush.bf16.msra.mxu0 %v1665
    %1698 = vmatpush.bf16.msra.mxu0 %v1663
    %1699 = vmatpush.bf16.msra.mxu0 %v1661
    %1700 = vmatpush.bf16.msra.mxu0 %v1659
    %1701 = vmatmul.bf16.gmra.mxu0 %v1682
    %v1702 = vpop.f32.mrf.mxu0
    %v1703 = vadd.f32 0.0, %v1702
    %v1704 = vpop.f32.mrf.mxu0
    %v1705 = vadd.f32 0.0, %v1704
    %1706 = vmatmul.bf16.gmra.mxu0 %v1685
    %v1707 = vpop.f32.mrf.mxu0
    %v1708 = vadd.f32 0.0, %v1707
    %v1709 = vpop.f32.mrf.mxu0
    %v1710 = vadd.f32 0.0, %v1709
    %1711 = vdwg.mxu0
    %1712 = vmatpush.bf16.msra.mxu0 0
    %1713 = vmatpush.bf16.msra.mxu0 0
    %1714 = vmatpush.bf16.msra.mxu0 %v1691
    %1715 = vmatpush.bf16.msra.mxu0 %v1668
    %1716 = vmatpush.bf16.msra.mxu0 %v1666
    %1717 = vmatpush.bf16.msra.mxu0 %v1664
    %1718 = vmatpush.bf16.msra.mxu0 %v1662
    %1719 = vmatpush.bf16.msra.mxu0 %v1660
    %1720 = vmatmul.bf16.gmra.mxu0 %v1682
    %v1721 = vpop.f32.mrf.mxu0
    %v1722 = vadd.f32 0.0, %v1721
    %v1723 = vpop.f32.mrf.mxu0
    %v1724 = vadd.f32 0.0, %v1723
    %1725 = vmatmul.bf16.gmra.mxu0 %v1685
    %v1726 = vpop.f32.mrf.mxu0
    %v1727 = vadd.f32 0.0, %v1726
    %v1728 = vpop.f32.mrf.mxu0
    %v1729 = vadd.f32 0.0, %v1728
    %1730 = vdwg.mxu0
    %v1731 = vadd.f32 %v1600, %v1703
    %v1732 = vadd.f32 %v1601, %v1722
    %v1733 = vadd.f32 %v1602, %v1705
    %v1734 = vadd.f32 %v1603, %v1724
    %v1735 = vadd.f32 %v1604, %v1708
    %v1736 = vadd.f32 %v1605, %v1727
    %v1737 = vadd.f32 %v1606, %v1710
    %v1738 = vadd.f32 %v1607, %v1729
    %v1739 = vld [vmem:[#allocation2 + $0x5] sm:$0xff]
    %v1740 = vld [vmem:[#allocation2 + $0xd] sm:$0xff]
    %v1741 = vld [vmem:[#allocation2 + $0x15] sm:$0xff]
    %v1742 = vld [vmem:[#allocation2 + $0x1d] sm:$0xff]
    %s1743 = scalar_lea.vmem %s7, 440
    %v1744 = vld [vmem:[%s1743] sm:$0xff]
    %v1745 = vld [vmem:[%s1743 + $0x8] sm:$0xff]
    %v1746 = vld [vmem:[%s1743 + $0x10] sm:$0xff]
    %v1747 = vld [vmem:[%s1743 + $0x18] sm:$0xff]
    %v1748 = vld [vmem:[%s1743 + $0x20] sm:$0xff]
    %v1749 = vld [vmem:[%s1743 + $0x28] sm:$0xff]
    %v1750 = vld [vmem:[%s1743 + $0x30] sm:$0xff]
    %v1751 = vld [vmem:[%s1743 + $0x38] sm:$0xff]
    %v1752 = vld [vmem:[%s1743 + $0x40] sm:$0xff]
    %v1753 = vld [vmem:[%s1743 + $0x48] sm:$0xff]
    %v1754 = vld [vmem:[%s1743 + $0x50] sm:$0x33]
    %v1755 = vpack.c.bf16 %v1740, %v1739
    %v1756 = vpack.c.bf16 %v1742, %v1741
    %v1768 = vunpack.c.l.b16 %v1744
    %v1769 = vunpack.c.h.b16 %v1744
    %v1770 = vunpack.c.l.b16 %v1745
    %v1771 = vunpack.c.h.b16 %v1745
    %v1772 = vunpack.c.l.b16 %v1746
    %v1773 = vunpack.c.h.b16 %v1746
    %v1774 = vunpack.c.l.b16 %v1747
    %v1775 = vunpack.c.h.b16 %v1747
    %v1776 = vunpack.c.l.b16 %v1748
    %v1777 = vunpack.c.h.b16 %v1748
    %v1778 = vunpack.c.l.b16 %v1749
    %v1779 = vunpack.c.h.b16 %v1749
    %v1780 = vunpack.c.l.b16 %v1750
    %v1781 = vunpack.c.h.b16 %v1750
    %v1782 = vunpack.c.l.b16 %v1751
    %v1783 = vunpack.c.h.b16 %v1751
    %v1784 = vunpack.c.l.b16 %v1752
    %v1785 = vunpack.c.h.b16 %v1752
    %v1786 = vunpack.c.l.b16 %v1753
    %v1787 = vunpack.c.h.b16 %v1753
    %v1788 = vunpack.c.l.b16 %v1754
    %v1789 = vunpack.c.h.b16 %v1754
    %v1790 = vpack.c.b16 %v1770, %v1768
    %v1791 = vpack.c.b16 %v1771, %v1769
    %v1792 = vpack.c.b16 %v1774, %v1772
    %v1793 = vpack.c.b16 %v1775, %v1773
    %v1794 = vpack.c.b16 %v1778, %v1776
    %v1795 = vpack.c.b16 %v1779, %v1777
    %v1796 = vpack.c.b16 %v1782, %v1780
    %v1797 = vpack.c.b16 %v1783, %v1781
    %v1798 = vpack.c.b16 %v1786, %v1784
    %v1799 = vpack.c.b16 %v1787, %v1785
    %v1800 = vpack.c.b16 %v1788, %v1788
    %v1801 = vpack.c.b16 %v1789, %v1789
    %v1813 = vsel %vm1098, %v1755, 0
    %v1816 = vsel %vm1098, %v1756, 0
    %v1819 = vsel %vm1196, %v1800, 0
    %v1822 = vsel %vm1196, %v1801, 0
    %1824 = vmatpush.bf16.msra.mxu0 0
    %1825 = vmatpush.bf16.msra.mxu0 0
    %1826 = vmatpush.bf16.msra.mxu0 %v1819
    %1827 = vmatpush.bf16.msra.mxu0 %v1798
    %1828 = vmatpush.bf16.msra.mxu0 %v1796
    %1829 = vmatpush.bf16.msra.mxu0 %v1794
    %1830 = vmatpush.bf16.msra.mxu0 %v1792
    %1831 = vmatpush.bf16.msra.mxu0 %v1790
    %1832 = vmatmul.bf16.gmra.mxu0 %v1813
    %v1833 = vpop.f32.mrf.mxu0
    %v1834 = vadd.f32 0.0, %v1833
    %v1835 = vpop.f32.mrf.mxu0
    %v1836 = vadd.f32 0.0, %v1835
    %1837 = vmatmul.bf16.gmra.mxu0 %v1816
    %v1838 = vpop.f32.mrf.mxu0
    %v1839 = vadd.f32 0.0, %v1838
    %v1840 = vpop.f32.mrf.mxu0
    %v1841 = vadd.f32 0.0, %v1840
    %1842 = vdwg.mxu0
    %1843 = vmatpush.bf16.msra.mxu0 0
    %1844 = vmatpush.bf16.msra.mxu0 0
    %1845 = vmatpush.bf16.msra.mxu0 %v1822
    %1846 = vmatpush.bf16.msra.mxu0 %v1799
    %1847 = vmatpush.bf16.msra.mxu0 %v1797
    %1848 = vmatpush.bf16.msra.mxu0 %v1795
    %1849 = vmatpush.bf16.msra.mxu0 %v1793
    %1850 = vmatpush.bf16.msra.mxu0 %v1791
    %1851 = vmatmul.bf16.gmra.mxu0 %v1813
    %v1852 = vpop.f32.mrf.mxu0
    %v1853 = vadd.f32 0.0, %v1852
    %v1854 = vpop.f32.mrf.mxu0
    %v1855 = vadd.f32 0.0, %v1854
    %1856 = vmatmul.bf16.gmra.mxu0 %v1816
    %v1857 = vpop.f32.mrf.mxu0
    %v1858 = vadd.f32 0.0, %v1857
    %v1859 = vpop.f32.mrf.mxu0
    %v1860 = vadd.f32 0.0, %v1859
    %1861 = vdwg.mxu0
    %v1862 = vadd.f32 %v1731, %v1834
    %v1863 = vadd.f32 %v1732, %v1853
    %v1864 = vadd.f32 %v1733, %v1836
    %v1865 = vadd.f32 %v1734, %v1855
    %v1866 = vadd.f32 %v1735, %v1839
    %v1867 = vadd.f32 %v1736, %v1858
    %v1868 = vadd.f32 %v1737, %v1841
    %v1869 = vadd.f32 %v1738, %v1860
    %v1870 = vld [vmem:[%s8] sm:$0x3]
    %v1872 = vperm.slane %v1870, 0
    %v1873 = vperm.slane %v1870, 1
    %v1876 = vadd.f32 %v1862, %v1872
    %v1877 = vadd.f32 %v1863, %v1873
    %v1878 = vadd.f32 %v1864, %v1872
    %v1879 = vadd.f32 %v1865, %v1873
    %v1880 = vadd.f32 %v1866, %v1872
    %v1881 = vadd.f32 %v1867, %v1873
    %v1882 = vadd.f32 %v1868, %v1872
    %v1883 = vadd.f32 %v1869, %v1873
    %v1884 = vmax.f32 %v1876, 0.0
    %v1885 = vmax.f32 %v1877, 0.0
    %v1886 = vmax.f32 %v1878, 0.0
    %v1887 = vmax.f32 %v1879, 0.0
    %v1888 = vmax.f32 %v1880, 0.0
    %v1889 = vmax.f32 %v1881, 0.0
    %v1890 = vmax.f32 %v1882, 0.0
    %v1891 = vmax.f32 %v1883, 0.0
    %v1892 = vld [vmem:[%s9] sm:$0xf]
    %v1893 = vld [vmem:[%s9 + $0x4] sm:$0xf]
    %v1894 = vld [vmem:[%s9 + $0x8] sm:$0xf]
    %v1895 = vld [vmem:[%s9 + $0xc] sm:$0xf]
    %v1896 = vld [vmem:[%s9 + $0x10] sm:$0xf]
    %v1897 = vld [vmem:[%s9 + $0x14] sm:$0xf]
    %v1898 = vld [vmem:[%s9 + $0x18] sm:$0xf]
    %v1899 = vld [vmem:[%s9 + $0x1c] sm:$0xf]
    %v1900 = vld [vmem:[%s9 + $0x20] sm:$0xf]
    %v1901 = vld [vmem:[%s9 + $0x24] sm:$0xf]
    %v1902 = vld [vmem:[%s9 + $0x28] sm:$0xf]
    %v1903 = vld [vmem:[%s9 + $0x2c] sm:$0xf]
    %v1904 = vld [vmem:[%s9 + $0x30] sm:$0xf]
    %v1905 = vld [vmem:[%s9 + $0x34] sm:$0xf]
    %v1906 = vld [vmem:[%s9 + $0x38] sm:$0xf]
    %v1907 = vld [vmem:[%s9 + $0x3c] sm:$0xf]
    %v1908 = vld [vmem:[%s9 + $0x40] sm:$0xf]
    %v1909 = vpack.c.bf16 %v1886, %v1884
    %v1910 = vpack.c.bf16 %v1887, %v1885
    %v1911 = vpack.c.bf16 %v1890, %v1888
    %v1912 = vpack.c.bf16 %v1891, %v1889
    %v1930 = vunpack.c.l.b16 %v1892
    %v1931 = vunpack.c.l.b16 %v1893
    %v1932 = vunpack.c.l.b16 %v1894
    %v1933 = vunpack.c.l.b16 %v1895
    %v1934 = vunpack.c.l.b16 %v1896
    %v1935 = vunpack.c.l.b16 %v1897
    %v1936 = vunpack.c.l.b16 %v1898
    %v1937 = vunpack.c.l.b16 %v1899
    %v1938 = vunpack.c.l.b16 %v1900
    %v1939 = vunpack.c.l.b16 %v1901
    %v1940 = vunpack.c.l.b16 %v1902
    %v1941 = vunpack.c.l.b16 %v1903
    %v1942 = vunpack.c.l.b16 %v1904
    %v1943 = vunpack.c.l.b16 %v1905
    %v1944 = vunpack.c.l.b16 %v1906
    %v1945 = vunpack.c.l.b16 %v1907
    %v1946 = vunpack.c.l.b16 %v1908
    %v1947 = vpack.c.b16 %v1931, %v1930
    %v1948 = vpack.c.b16 %v1933, %v1932
    %v1949 = vpack.c.b16 %v1935, %v1934
    %v1950 = vpack.c.b16 %v1937, %v1936
    %v1951 = vpack.c.b16 %v1939, %v1938
    %v1952 = vpack.c.b16 %v1941, %v1940
    %v1953 = vpack.c.b16 %v1943, %v1942
    %v1954 = vpack.c.b16 %v1945, %v1944
    %v1955 = vpack.c.b16 %v1946, %v1946
    %vm1964 = vcmask 56320
    %v1966 = vsel %vm1964, %v1910, 0
    %v1969 = vsel %vm1964, %v1912, 0
    %vm1971 = vcmask 1042432
    %v1972 = vsel %vm1971, 4294967295, 65535
    %v1973 = vsel %vm796, %v1972, 0
    %v1975 = vand.u32 %v1955, %v1973
    %1977 = vmatpush.bf16.msra.mxu0 %v1954
    %1978 = vmatpush.bf16.msra.mxu0 %v1953
    %1979 = vmatpush.bf16.msra.mxu0 %v1952
    %1980 = vmatpush.bf16.msra.mxu0 %v1951
    %1981 = vmatpush.bf16.msra.mxu0 %v1950
    %1982 = vmatpush.bf16.msra.mxu0 %v1949
    %1983 = vmatpush.bf16.msra.mxu0 %v1948
    %1984 = vmatpush.bf16.msra.mxu0 %v1947
    %1985 = vmatmul.bf16.gmra.mxu0 %v1909
    %v1986 = vpop.f32.mrf.mxu0
    %v1987 = vadd.f32 0.0, %v1986
    %v1988 = vpop.f32.mrf.mxu0
    %v1989 = vadd.f32 0.0, %v1988
    %1990 = vmatmul.bf16.gmra.mxu0 %v1911
    %v1991 = vpop.f32.mrf.mxu0
    %v1992 = vadd.f32 0.0, %v1991
    %v1993 = vpop.f32.mrf.mxu0
    %v1994 = vadd.f32 0.0, %v1993
    %1995 = vdwg.mxu0
    %1996 = vmatpush.bf16.msra.mxu0 0
    %1997 = vmatpush.bf16.msra.mxu0 0
    %1998 = vmatpush.bf16.msra.mxu0 0
    %1999 = vmatpush.bf16.msra.mxu0 0
    %2000 = vmatpush.bf16.msra.mxu0 0
    %2001 = vmatpush.bf16.msra.mxu0 0
    %2002 = vmatpush.bf16.msra.mxu0 0
    %2003 = vmatpush.bf16.msra.mxu0 %v1975
    %2004 = vmatmul.bf16.gmra.mxu0 %v1966
    %v2005 = vpop.f32.mrf.mxu0
    %v2006 = vadd.f32 %v1987, %v2005
    %v2007 = vpop.f32.mrf.mxu0
    %v2008 = vadd.f32 %v1989, %v2007
    %2009 = vmatmul.bf16.gmra.mxu0 %v1969
    %v2010 = vpop.f32.mrf.mxu0
    %v2011 = vadd.f32 %v1992, %v2010
    %v2012 = vpop.f32.mrf.mxu0
    %v2013 = vadd.f32 %v1994, %v2012
    %2014 = vdwg.mxu0
    %v2015 = vld [vmem:[%s10] sm:$0xf]
    %v2016 = vld [vmem:[%s10 + $0x4] sm:$0xf]
    %v2017 = vld [vmem:[%s10 + $0x8] sm:$0xf]
    %v2018 = vld [vmem:[%s10 + $0xc] sm:$0xf]
    %v2019 = vld [vmem:[%s10 + $0x10] sm:$0xf]
    %v2020 = vld [vmem:[%s10 + $0x14] sm:$0xf]
    %v2021 = vld [vmem:[%s10 + $0x18] sm:$0xf]
    %v2022 = vld [vmem:[%s10 + $0x1c] sm:$0xf]
    %v2023 = vld [vmem:[%s10 + $0x20] sm:$0xf]
    %v2024 = vld [vmem:[%s10 + $0x24] sm:$0xf]
    %v2025 = vld [vmem:[%s10 + $0x28] sm:$0xf]
    %v2026 = vld [vmem:[%s10 + $0x2c] sm:$0xf]
    %v2027 = vld [vmem:[%s10 + $0x30] sm:$0xf]
    %v2028 = vld [vmem:[%s10 + $0x34] sm:$0xf]
    %v2029 = vld [vmem:[%s10 + $0x38] sm:$0xf]
    %v2030 = vld [vmem:[%s10 + $0x3c] sm:$0xf]
    %v2031 = vld [vmem:[%s10 + $0x40] sm:$0xf]
    %v2049 = vunpack.c.l.b16 %v2015
    %v2050 = vunpack.c.l.b16 %v2016
    %v2051 = vunpack.c.l.b16 %v2017
    %v2052 = vunpack.c.l.b16 %v2018
    %v2053 = vunpack.c.l.b16 %v2019
    %v2054 = vunpack.c.l.b16 %v2020
    %v2055 = vunpack.c.l.b16 %v2021
    %v2056 = vunpack.c.l.b16 %v2022
    %v2057 = vunpack.c.l.b16 %v2023
    %v2058 = vunpack.c.l.b16 %v2024
    %v2059 = vunpack.c.l.b16 %v2025
    %v2060 = vunpack.c.l.b16 %v2026
    %v2061 = vunpack.c.l.b16 %v2027
    %v2062 = vunpack.c.l.b16 %v2028
    %v2063 = vunpack.c.l.b16 %v2029
    %v2064 = vunpack.c.l.b16 %v2030
    %v2065 = vunpack.c.l.b16 %v2031
    %v2066 = vpack.c.b16 %v2050, %v2049
    %v2067 = vpack.c.b16 %v2052, %v2051
    %v2068 = vpack.c.b16 %v2054, %v2053
    %v2069 = vpack.c.b16 %v2056, %v2055
    %v2070 = vpack.c.b16 %v2058, %v2057
    %v2071 = vpack.c.b16 %v2060, %v2059
    %v2072 = vpack.c.b16 %v2062, %v2061
    %v2073 = vpack.c.b16 %v2064, %v2063
    %v2074 = vpack.c.b16 %v2065, %v2065
    %v2084 = vand.u32 %v2074, %v1973
    %2086 = vmatpush.bf16.msra.mxu0 %v2073
    %2087 = vmatpush.bf16.msra.mxu0 %v2072
    %2088 = vmatpush.bf16.msra.mxu0 %v2071
    %2089 = vmatpush.bf16.msra.mxu0 %v2070
    %2090 = vmatpush.bf16.msra.mxu0 %v2069
    %2091 = vmatpush.bf16.msra.mxu0 %v2068
    %2092 = vmatpush.bf16.msra.mxu0 %v2067
    %2093 = vmatpush.bf16.msra.mxu0 %v2066
    %2094 = vmatmul.bf16.gmra.mxu0 %v1909
    %v2095 = vpop.f32.mrf.mxu0
    %v2096 = vadd.f32 0.0, %v2095
    %v2097 = vpop.f32.mrf.mxu0
    %v2098 = vadd.f32 0.0, %v2097
    %2099 = vmatmul.bf16.gmra.mxu0 %v1911
    %v2100 = vpop.f32.mrf.mxu0
    %v2101 = vadd.f32 0.0, %v2100
    %v2102 = vpop.f32.mrf.mxu0
    %v2103 = vadd.f32 0.0, %v2102
    %2104 = vdwg.mxu0
    %2105 = vmatpush.bf16.msra.mxu0 0
    %2106 = vmatpush.bf16.msra.mxu0 0
    %2107 = vmatpush.bf16.msra.mxu0 0
    %2108 = vmatpush.bf16.msra.mxu0 0
    %2109 = vmatpush.bf16.msra.mxu0 0
    %2110 = vmatpush.bf16.msra.mxu0 0
    %2111 = vmatpush.bf16.msra.mxu0 0
    %2112 = vmatpush.bf16.msra.mxu0 %v2084
    %2113 = vmatmul.bf16.gmra.mxu0 %v1966
    %v2114 = vpop.f32.mrf.mxu0
    %v2115 = vadd.f32 %v2096, %v2114
    %v2116 = vpop.f32.mrf.mxu0
    %v2117 = vadd.f32 %v2098, %v2116
    %2118 = vmatmul.bf16.gmra.mxu0 %v1969
    %v2119 = vpop.f32.mrf.mxu0
    %v2120 = vadd.f32 %v2101, %v2119
    %v2121 = vpop.f32.mrf.mxu0
    %v2122 = vadd.f32 %v2103, %v2121
    %2123 = vdwg.mxu0
    %v2124 = vmax.f32 %v2006, %v2115
    %v2125 = vmax.f32 %v2008, %v2117
    %v2126 = vmax.f32 %v2011, %v2120
    %v2127 = vmax.f32 %v2013, %v2122
    %v2128 = vld [vmem:[%s11] sm:$0xf]
    %v2129 = vpack.c.bf16 %v2125, %v2124
    %v2130 = vpack.c.bf16 %v2127, %v2126
    %v2132 = vsel %vm123, %v2128, 0
    %2134 = vmatpush.bf16.msra.mxu0 0
    %2135 = vmatpush.bf16.msra.mxu0 0
    %2136 = vmatpush.bf16.msra.mxu0 0
    %2137 = vmatpush.bf16.msra.mxu0 0
    %2138 = vmatpush.bf16.msra.mxu0 0
    %2139 = vmatpush.bf16.msra.mxu0 0
    %2140 = vmatpush.bf16.msra.mxu0 %v2130
    %2141 = vmatpush.bf16.msra.mxu0 %v2129
    %2142 = vmatmul.bf16.gmra.mxu0 %v2132
    %v2143 = vpop.f32.mrf.mxu0
    %v2144 = vadd.f32 0.0, %v2143
    %v2145 = vpop.f32.mrf.mxu0
    %2146 = vdwg.mxu0
    %v2147 = vld [vmem:[%s12] sm:$0xf]
    %v2149 = vsel %vm123, %v2147, 0
    %2151 = vmatpush.bf16.msra.mxu0 0
    %2152 = vmatpush.bf16.msra.mxu0 0
    %2153 = vmatpush.bf16.msra.mxu0 0
    %2154 = vmatpush.bf16.msra.mxu0 0
    %2155 = vmatpush.bf16.msra.mxu0 0
    %2156 = vmatpush.bf16.msra.mxu0 0
    %2157 = vmatpush.bf16.msra.mxu0 %v2130
    %2158 = vmatpush.bf16.msra.mxu0 %v2129
    %2159 = vmatmul.bf16.gmra.mxu0 %v2149
    %v2160 = vpop.f32.mrf.mxu0
    %v2161 = vadd.f32 0.0, %v2160
    %v2162 = vpop.f32.mrf.mxu0
    %2163 = vdwg.mxu0
    %v2164 = vmax.f32 %v2144, %v2161
    %v2165 = vld [vmem:[%s13] sm:$0xf]
    %v2166 = vld [vmem:[%s13 + $0x4] sm:$0xf]
    %v2167 = vld [vmem:[%s13 + $0x8] sm:$0xf]
    %v2168 = vld [vmem:[%s13 + $0xc] sm:$0xf]
    %v2169 = vld [vmem:[%s13 + $0x10] sm:$0xf]
    %v2170 = vld [vmem:[%s13 + $0x14] sm:$0xf]
    %v2171 = vld [vmem:[%s13 + $0x18] sm:$0xf]
    %v2172 = vld [vmem:[%s13 + $0x1c] sm:$0x3]
    %v2173 = vpack.c.bf16 %v2164, %v2164
    %v2182 = vunpack.c.l.b16 %v2165
    %v2183 = vunpack.c.l.b16 %v2166
    %v2184 = vunpack.c.l.b16 %v2167
    %v2185 = vunpack.c.l.b16 %v2168
    %v2186 = vunpack.c.l.b16 %v2169
    %v2187 = vunpack.c.l.b16 %v2170
    %v2188 = vunpack.c.l.b16 %v2171
    %v2189 = vunpack.c.l.b16 %v2172
    %v2190 = vpack.c.b16 %v2183, %v2182
    %v2191 = vpack.c.b16 %v2185, %v2184
    %v2192 = vpack.c.b16 %v2187, %v2186
    %v2193 = vpack.c.b16 %v2189, %v2188
    %vm2197 = vcmask 490496
    %v2199 = vsel %vm2197, %v2173, 0
    %vm2201 = vcmask 1045504
    %v2203 = vsel %vm2201, %v2193, 0
    %2205 = vmatpush.bf16.msra.mxu0 0
    %2206 = vmatpush.bf16.msra.mxu0 0
    %2207 = vmatpush.bf16.msra.mxu0 0
    %2208 = vmatpush.bf16.msra.mxu0 0
    %2209 = vmatpush.bf16.msra.mxu0 %v2203
    %2210 = vmatpush.bf16.msra.mxu0 %v2192
    %2211 = vmatpush.bf16.msra.mxu0 %v2191
    %2212 = vmatpush.bf16.msra.mxu0 %v2190
    %2213 = vmatmul.bf16.gmra.mxu0 %v2199
    %v2214 = vpop.f32.mrf.mxu0
    %v2215 = vadd.f32 0.0, %v2214
    %v2216 = vpop.f32.mrf.mxu0
    %2217 = vdwg.mxu0
    %v2218 = vld [vmem:[%s14] sm:$0x1]
    %v2219 = vpack.c.bf16 %v2215, %v2215
    %vm2220 = vcmask 64512
    %v2222 = vsel %vm2220, %v2218, 0
    %v2225 = vsel %vm796, %v2219, 0
    %2227 = vmatpush.bf16.msra.mxu0 0
    %2228 = vmatpush.bf16.msra.mxu0 0
    %2229 = vmatpush.bf16.msra.mxu0 0
    %2230 = vmatpush.bf16.msra.mxu0 0
    %2231 = vmatpush.bf16.msra.mxu0 0
    %2232 = vmatpush.bf16.msra.mxu0 0
    %2233 = vmatpush.bf16.msra.mxu0 0
    %2234 = vmatpush.bf16.msra.mxu0 %v2225
    %2235 = vmatmul.bf16.gmra.mxu0 %v2222
    %v2236 = vpop.f32.mrf.mxu0
    %v2237 = vadd.f32 0.0, %v2236
    %v2238 = vpop.f32.mrf.mxu0
    %2239 = vdwg.mxu0
    %v2240 = vld [vmem:[%s15] sm:$0xf]
    %v2241 = vld [vmem:[%s15 + $0x4] sm:$0xf]
    %v2242 = vpack.c.bf16 %v2237, %v2237
    %v2243 = vld [vmem:[%s16] sm:$0x1]
    %v2245 = vperm.slane %v2243, 0
    %v2249 = vunpack.c.l.b16 %v2240
    %v2250 = vunpack.c.l.b16 %v2241
    %v2251 = vpack.c.b16 %v2250, %v2249
    %vm2252 = vcmask 121856
    %v2254 = vsel %vm2252, %v2242, 0
    %vm2256 = vcmask 1046528
    %vm2257 = vcmask 1047552
    %v2258 = vsel %vm2256, 4294967295, 65535
    %v2259 = vsel %vm2257, %v2258, 0
    %v2261 = vand.u32 %v2251, %v2259
    %2263 = vmatpush.bf16.msra.mxu0 0
    %2264 = vmatpush.bf16.msra.mxu0 0
    %2265 = vmatpush.bf16.msra.mxu0 0
    %2266 = vmatpush.bf16.msra.mxu0 0
    %2267 = vmatpush.bf16.msra.mxu0 0
    %2268 = vmatpush.bf16.msra.mxu0 0
    %2269 = vmatpush.bf16.msra.mxu0 0
    %2270 = vmatpush.bf16.msra.mxu0 %v2261
    %2271 = vmatmul.bf16.gmra.mxu0 %v2254
    %v2272 = vpop.f32.mrf.mxu0
    %v2273 = vadd.f32 %v2245, %v2272
    %v2274 = vpop.f32.mrf.mxu0
    %2275 = vdwg.mxu0
    %v2276 = vmax.f32 %v2273, 0.0
    %v2277 = vld [vmem:[%s17] sm:$0xf]
    %v2278 = vld [vmem:[%s17 + $0x4] sm:$0xf]
    %v2279 = vld [vmem:[%s17 + $0x8] sm:$0xf]
    %v2280 = vld [vmem:[%s17 + $0xc] sm:$0xf]
    %v2281 = vpack.c.bf16 %v2276, %v2276
    %v2282 = vld [vmem:[%s18] sm:$0x1]
    %v2284 = vperm.slane %v2282, 0
    %v2290 = vunpack.c.l.b16 %v2277
    %v2291 = vunpack.c.l.b16 %v2278
    %v2292 = vunpack.c.l.b16 %v2279
    %v2293 = vunpack.c.l.b16 %v2280
    %v2294 = vpack.c.b16 %v2291, %v2290
    %v2295 = vpack.c.b16 %v2293, %v2292
    %v2299 = vsel %vm123, %v2281, 0
    %2301 = vmatpush.bf16.msra.mxu0 0
    %2302 = vmatpush.bf16.msra.mxu0 0
    %2303 = vmatpush.bf16.msra.mxu0 0
    %2304 = vmatpush.bf16.msra.mxu0 0
    %2305 = vmatpush.bf16.msra.mxu0 0
    %2306 = vmatpush.bf16.msra.mxu0 0
    %2307 = vmatpush.bf16.msra.mxu0 %v2295
    %2308 = vmatpush.bf16.msra.mxu0 %v2294
    %2309 = vmatmul.bf16.gmra.mxu0 %v2299
    %v2310 = vpop.f32.mrf.mxu0
    %v2311 = vadd.f32 %v2284, %v2310
    %v2312 = vpop.f32.mrf.mxu0
    %2313 = vdwg.mxu0
    %v2314 = vmax.f32 %v2311, 0.0
    %v2315 = vld [vmem:[%s19] sm:$0xf]
    %v2316 = vld [vmem:[%s19 + $0x4] sm:$0xf]
    %v2317 = vld [vmem:[%s19 + $0x8] sm:$0xf]
    %v2318 = vld [vmem:[%s19 + $0xc] sm:$0xf]
    %v2319 = vld [vmem:[%s19 + $0x10] sm:$0xf]
    %v2320 = vld [vmem:[%s19 + $0x14] sm:$0xf]
    %v2321 = vld [vmem:[%s19 + $0x18] sm:$0xf]
    %v2322 = vld [vmem:[%s19 + $0x1c] sm:$0xf]
    %v2323 = vpack.c.bf16 %v2314, %v2314
    %v2324 = vld [vmem:[%s20] sm:$0x1]
    %v2326 = vperm.slane %v2324, 0
    %v2336 = vunpack.c.l.b16 %v2315
    %v2337 = vunpack.c.l.b16 %v2316
    %v2338 = vunpack.c.l.b16 %v2317
    %v2339 = vunpack.c.l.b16 %v2318
    %v2340 = vunpack.c.l.b16 %v2319
    %v2341 = vunpack.c.l.b16 %v2320
    %v2342 = vunpack.c.l.b16 %v2321
    %v2343 = vunpack.c.l.b16 %v2322
    %v2344 = vpack.c.b16 %v2337, %v2336
    %v2345 = vpack.c.b16 %v2339, %v2338
    %v2346 = vpack.c.b16 %v2341, %v2340
    %v2347 = vpack.c.b16 %v2343, %v2342
    %v2353 = vsel %vm1029, %v2323, 0
    %2355 = vmatpush.bf16.msra.mxu0 0
    %2356 = vmatpush.bf16.msra.mxu0 0
    %2357 = vmatpush.bf16.msra.mxu0 0
    %2358 = vmatpush.bf16.msra.mxu0 0
    %2359 = vmatpush.bf16.msra.mxu0 %v2347
    %2360 = vmatpush.bf16.msra.mxu0 %v2346
    %2361 = vmatpush.bf16.msra.mxu0 %v2345
    %2362 = vmatpush.bf16.msra.mxu0 %v2344
    %2363 = vmatmul.bf16.gmra.mxu0 %v2353
    %v2364 = vpop.f32.mrf.mxu0
    %v2365 = vadd.f32 %v2326, %v2364
    %v2366 = vpop.f32.mrf.mxu0
    %2367 = vdwg.mxu0
    %vm2368 = vcmask 74752
    %2369 = vst.msk [vmem:[#allocation3] sm:$0x3] %vm2368, %v2365
    // Predicated region
    $region86: #{mnet_forward.1} parent=1 // pred_check
      _
    $region87: #{mnet_forward.1} parent=1 // pred_check_branch
      %2371 = sbr.rel (0) target = $region89
    $region88: #{mnet_forward.1} parent=1 // pred_region
      %2373 = vsyncadd [#allocation4], 0
      %s2375 = sshll.u32 [#allocation3], 4
      %s2376 = int_to_ptr.vmem [resolvable:$true] %s2375
      %s2377 = sshll.u32 %s21, 4
      %s2378 = int_to_ptr.hbm [resolvable:$true] %s2377
      %2380 = dma.vmem_to_hbm [thread:$0]  %s2376, 32, %s2378, [#allocation4]
    $region89: #{mnet_forward.1} parent=1 // pred_fallthru
      _
    // Predicated region
    $region90: #{mnet_forward.1} parent=1 // pred_check
      _
    $region91: #{mnet_forward.1} parent=1 // pred_check_branch
      %2382 = sbr.rel (0) target = $region93
    $region92: #{mnet_forward.1} parent=1 // pred_region
      %2384 = dma.done [#allocation4], 32
    $region93: #{mnet_forward.1} parent=1 // pred_fallthru
      _
    %2385 = vsyncpa [#allocation4], 1

</llo_original>
